<compile_context>
chip_gen: v7x
topology: tpu7x:2x2x1
jax: 0.10.0
libtpu: 0.0.40
codegen_flags: <defaults>
</compile_context>

<pallas_src>
import math
import numpy as np
import jax
import jax.numpy as jnp
from jax import lax
from jax.experimental import pallas as pl
from jax.experimental.pallas import tpu as pltpu  # noqa: F401  (kept for TPU-specific extensions)

# ----- small, module-consistent sizes -----
BATCH = 2
SEQ = 8            # t
EMB = 32           # embedding_dim
HEADS = 2          # head_num
MLP_DIM = 64       # mlp_dim
HEAD_DIM = EMB // HEADS
# PyTorch code: self.dk = (embedding_dim // head_num) ** 1 / 2 -> (E//H)/2 = 8.0, NOT 1/sqrt.
# Reproduced bug-for-bug to match the module's forward semantics.
DK = (EMB // HEADS) ** 1 / 2
LN_EPS = 1e-5
INV_SQRT2 = 1.0 / math.sqrt(2.0)


def _layernorm(x, g, b):
    mean = jnp.mean(x, axis=-1, keepdims=True)
    var = jnp.mean((x - mean) ** 2, axis=-1, keepdims=True)
    return (x - mean) * lax.rsqrt(var + LN_EPS) * g + b


def encoder_block_kernel(x_ref, wqkv_ref, wo_ref, w1_ref, w2_ref, vecs_ref, o_ref):
    # Single invocation (no grid): x_ref holds the whole (B*T, E) token matrix in VMEM.
    x = x_ref[...]                                            # (BT, E)

    # Packed small vectors: rows [ln1_g, ln1_b, b1, b2, ln2_g, ln2_b], lane-padded to MLP_DIM.
    vecs = vecs_ref[...]
    ln1_g = vecs[0:1, :EMB]
    ln1_b = vecs[1:2, :EMB]
    b1 = vecs[2:3, :]
    b2 = vecs[3:4, :EMB]
    ln2_g = vecs[4:5, :EMB]
    ln2_b = vecs[5:6, :EMB]

    # ---- fused QKV projection: one MXU push over all B*T tokens ----
    # packed columns: [q_h0 | q_h1 | k_h0 | k_h1 | v_h0 | v_h1], each HEAD_DIM wide
    qkv = jnp.dot(x, wqkv_ref[...], preferred_element_type=jnp.float32)   # (BT, 3E)

    # ---- per-(batch, head) attention, statically unrolled (B=2, H=2) ----
    rows = []
    for b in range(BATCH):
        r0 = b * SEQ
        x_b = x[r0:r0 + SEQ, :]                               # (T, E) sublane slice
        attn_b = jnp.zeros((SEQ, EMB), jnp.float32)
        for h in range(HEADS):
            q = qkv[r0:r0 + SEQ, (0 * HEADS + h) * HEAD_DIM:(0 * HEADS + h + 1) * HEAD_DIM]
            k = qkv[r0:r0 + SEQ, (1 * HEADS + h) * HEAD_DIM:(1 * HEADS + h + 1) * HEAD_DIM]
            v = qkv[r0:r0 + SEQ, (2 * HEADS + h) * HEAD_DIM:(2 * HEADS + h + 1) * HEAD_DIM]
            # contract on head_dim of both operands -> no explicit k.T relayout
            energy = lax.dot_general(q, k, (((1,), (1,)), ((), ())),
                                     preferred_element_type=jnp.float32) * DK   # (T, T)
            energy = energy - jnp.max(energy, axis=-1, keepdims=True)
            p = jnp.exp(energy)
            attn = p * pl.reciprocal(jnp.sum(p, axis=-1, keepdims=True), approx=True)
            ctx = jnp.dot(attn, v, preferred_element_type=jnp.float32)    # (T, hd)
            # fold the 'b h t d -> b t (h d)' concat into the output projection:
            # attn_out = sum_h ctx_h @ wo[h*hd:(h+1)*hd, :]   (sublane slice of wo)
            attn_b = attn_b + jnp.dot(ctx, wo_ref[h * HEAD_DIM:(h + 1) * HEAD_DIM, :],
                                      preferred_element_type=jnp.float32)
        # TODO(synk): nn.Dropout(0.1) treated as identity (inference mode)
        rows.append(x_b + attn_b)
    y = jnp.concatenate(rows, axis=0)                         # (BT, E), sublane-only concat

    x1 = _layernorm(y, ln1_g, ln1_b)

    # ---- MLP over all B*T tokens ----
    h1 = jnp.dot(x1, w1_ref[...], preferred_element_type=jnp.float32) + b1
    # exact GELU (torch nn.GELU default, approximate='none') kept for semantic fidelity
    h1 = 0.5 * h1 * (1.0 + lax.erf(h1 * INV_SQRT2))
    h2 = jnp.dot(h1, w2_ref[...], preferred_element_type=jnp.float32) + b2

    x2 = _layernorm(x1 + h2, ln2_g, ln2_b)
    o_ref[...] = x2.astype(o_ref.dtype)


def transformer_encoder_block(x, kernel_params):
    (wqkv_packed, wo, w1, w2, vecs) = kernel_params
    B, T, E = x.shape
    x_flat = x.reshape(B * T, E)
    out_flat = pl.pallas_call(
        encoder_block_kernel,
        out_shape=jax.ShapeDtypeStruct((B * T, E), x.dtype),
    )(x_flat, wqkv_packed, wo, w1, w2, vecs)
    return out_flat.reshape(B, T, E)


def make_params(key):
    ks = jax.random.split(key, 6)
    scale = 0.05
    # qkv_layer: Linear(E, 3E, bias=False); store W^T with shape (E, 3E), used as x @ w_qkv
    w_qkv = scale * jax.random.normal(ks[0], (EMB, 3 * EMB), jnp.float32)
    wo = scale * jax.random.normal(ks[1], (EMB, EMB), jnp.float32)        # out_attention (no bias)
    w1 = scale * jax.random.normal(ks[2], (EMB, MLP_DIM), jnp.float32)
    b1 = scale * jax.random.normal(ks[3], (MLP_DIM,), jnp.float32)
    w2 = scale * jax.random.normal(ks[4], (MLP_DIM, EMB), jnp.float32)
    b2 = scale * jax.random.normal(ks[5], (EMB,), jnp.float32)
    ln1_g = jnp.ones((EMB,), jnp.float32)
    ln1_b = jnp.zeros((EMB,), jnp.float32)
    ln2_g = jnp.ones((EMB,), jnp.float32)
    ln2_b = jnp.zeros((EMB,), jnp.float32)

    # rearrange 'b t (d k h) -> k b h t d'  =>  qkv column c = d*(3*H) + k*H + h.
    # Pre-permute on host into [q_h0|q_h1|k_h0|k_h1|v_h0|v_h1] column order (d minor):
    w_r = w_qkv.reshape(EMB, HEAD_DIM, 3, HEADS)              # (e, d, k, h)
    wqkv_packed = jnp.transpose(w_r, (0, 2, 3, 1)).reshape(EMB, 3 * EMB)  # (e, (k,h,d))

    # pack the six 1-row params into a single (8, MLP_DIM) slab
    vecs = jnp.zeros((8, MLP_DIM), jnp.float32)
    vecs = vecs.at[0, :EMB].set(ln1_g)
    vecs = vecs.at[1, :EMB].set(ln1_b)
    vecs = vecs.at[2, :].set(b1)
    vecs = vecs.at[3, :EMB].set(b2)
    vecs = vecs.at[4, :EMB].set(ln2_g)
    vecs = vecs.at[5, :EMB].set(ln2_b)

    kernel_params = (wqkv_packed, wo, w1, w2, vecs)
    ref_params = (w_qkv, wo, ln1_g, ln1_b, w1, b1, w2, b2, ln2_g, ln2_b)
    return kernel_params, ref_params


def reference(x, ref_params):
    """Pure-JAX reference mirroring the PyTorch forward."""
    (w_qkv, wo, ln1_g, ln1_b, w1, b1, w2, b2, ln2_g, ln2_b) = ref_params
    B, T, E = x.shape
    qkv = x @ w_qkv                                             # (B,T,3E)
    qkv = qkv.reshape(B, T, HEAD_DIM, 3, HEADS)                 # (d k h) split
    q = jnp.transpose(qkv[:, :, :, 0, :], (0, 3, 1, 2))         # (B,H,T,d)
    k = jnp.transpose(qkv[:, :, :, 1, :], (0, 3, 1, 2))
    v = jnp.transpose(qkv[:, :, :, 2, :], (0, 3, 1, 2))
    energy = jnp.einsum('bhid,bhjd->bhij', q, k) * DK
    attn = jax.nn.softmax(energy, axis=-1)
    ctx = jnp.einsum('bhij,bhjd->bhid', attn, v)
    ctx = jnp.transpose(ctx, (0, 2, 1, 3)).reshape(B, T, E)     # 'b h t d -> b t (h d)'
    a = ctx @ wo
    x1 = _layernorm(x + a, ln1_g, ln1_b)
    h1 = x1 @ w1 + b1
    h1 = 0.5 * h1 * (1.0 + lax.erf(h1 / jnp.sqrt(2.0)))
    h2 = h1 @ w2 + b2
    return _layernorm(x1 + h2, ln2_g, ln2_b)


if __name__ == "__main__":
    key = jax.random.PRNGKey(0)
    kx, kp = jax.random.split(key)
    x = jax.random.normal(kx, (BATCH, SEQ, EMB), jnp.float32)
    kernel_params, ref_params = make_params(kp)

    out = jax.block_until_ready(transformer_encoder_block(x, kernel_params))
    ref = jax.block_until_ready(reference(x, ref_params))
    np.testing.assert_allclose(np.asarray(out), np.asarray(ref), rtol=1e-2, atol=1e-2)

    print("KERNEL_OK")
</pallas_src>

<mosaic_0001>
module attributes {stable_mosaic.version = 11 : i64} {
  func.func @encoder_block_kernel(%arg0: memref<16x32xf32, #tpu.memory_space<vmem>>, %arg1: memref<32x96xf32, #tpu.memory_space<vmem>>, %arg2: memref<32x32xf32, #tpu.memory_space<vmem>>, %arg3: memref<32x64xf32, #tpu.memory_space<vmem>>, %arg4: memref<64x32xf32, #tpu.memory_space<vmem>>, %arg5: memref<8x64xf32, #tpu.memory_space<vmem>>, %arg6: memref<16x32xf32, #tpu.memory_space<vmem>>) attributes {dimension_semantics = [], scalar_prefetch = 0 : i64, scratch_operands = 0 : i64, tpu.core_type = #tpu.core_type<tc>} {
    %c0 = arith.constant 0 : index
    %c0_0 = arith.constant 0 : index
    %0 = vector.load %arg0[%c0, %c0_0] : memref<16x32xf32, #tpu.memory_space<vmem>>, vector<16x32xf32>
    %c0_1 = arith.constant 0 : index
    %c0_2 = arith.constant 0 : index
    %1 = vector.load %arg5[%c0_1, %c0_2] : memref<8x64xf32, #tpu.memory_space<vmem>>, vector<8x64xf32>
    %2 = vector.extract_strided_slice %1 {offsets = [0, 0], sizes = [1, 32], strides = [1, 1]} : vector<8x64xf32> to vector<1x32xf32>
    %3 = vector.extract_strided_slice %1 {offsets = [1, 0], sizes = [1, 32], strides = [1, 1]} : vector<8x64xf32> to vector<1x32xf32>
    %4 = vector.extract_strided_slice %1 {offsets = [2, 0], sizes = [1, 64], strides = [1, 1]} : vector<8x64xf32> to vector<1x64xf32>
    %5 = vector.extract_strided_slice %1 {offsets = [3, 0], sizes = [1, 32], strides = [1, 1]} : vector<8x64xf32> to vector<1x32xf32>
    %6 = vector.extract_strided_slice %1 {offsets = [4, 0], sizes = [1, 32], strides = [1, 1]} : vector<8x64xf32> to vector<1x32xf32>
    %7 = vector.extract_strided_slice %1 {offsets = [5, 0], sizes = [1, 32], strides = [1, 1]} : vector<8x64xf32> to vector<1x32xf32>
    %c0_3 = arith.constant 0 : index
    %c0_4 = arith.constant 0 : index
    %8 = vector.load %arg1[%c0_3, %c0_4] : memref<32x96xf32, #tpu.memory_space<vmem>>, vector<32x96xf32>
    %cst = arith.constant dense<0.000000e+00> : vector<16x96xf32>
    %9 = tpu.matmul %0, %8, %cst {dimension_numbers = #tpu.dot_dimension_numbers<[1], [0], [0], [1], [0, 0, 1, 1], [], []>} : vector<16x32xf32>, vector<32x96xf32>, vector<16x96xf32> -> vector<16x96xf32>
    %10 = vector.extract_strided_slice %0 {offsets = [0, 0], sizes = [8, 32], strides = [1, 1]} : vector<16x32xf32> to vector<8x32xf32>
    %cst_5 = arith.constant 0.000000e+00 : f32
    %11 = vector.broadcast %cst_5 : f32 to vector<8x32xf32>
    %12 = vector.extract_strided_slice %9 {offsets = [0, 0], sizes = [8, 16], strides = [1, 1]} : vector<16x96xf32> to vector<8x16xf32>
    %13 = vector.extract_strided_slice %9 {offsets = [0, 32], sizes = [8, 16], strides = [1, 1]} : vector<16x96xf32> to vector<8x16xf32>
    %14 = vector.extract_strided_slice %9 {offsets = [0, 64], sizes = [8, 16], strides = [1, 1]} : vector<16x96xf32> to vector<8x16xf32>
    %cst_6 = arith.constant dense<0.000000e+00> : vector<8x8xf32>
    %15 = tpu.matmul %12, %13, %cst_6 {dimension_numbers = #tpu.dot_dimension_numbers<[1], [1], [0], [0], [0, 0, 1, 0], [], []>} : vector<8x16xf32>, vector<8x16xf32>, vector<8x8xf32> -> vector<8x8xf32>
    %cst_7 = arith.constant 8.000000e+00 : f32
    %16 = vector.broadcast %cst_7 : f32 to vector<8x8xf32>
    %17 = arith.mulf %15, %16 : vector<8x8xf32>
    %cst_8 = arith.constant dense<0xFF800000> : vector<8xf32>
    %18 = vector.multi_reduction <maximumf>, %17, %cst_8 [1] : vector<8x8xf32> to vector<8xf32>
    %19 = vector.shape_cast %18 : vector<8xf32> to vector<8x1xf32>
    %20 = vector.broadcast %19 : vector<8x1xf32> to vector<8x8xf32>
    %21 = arith.subf %17, %20 : vector<8x8xf32>
    %22 = math.exp %21 : vector<8x8xf32>
    %cst_9 = arith.constant dense<0.000000e+00> : vector<8xf32>
    %23 = vector.multi_reduction <add>, %22, %cst_9 [1] : vector<8x8xf32> to vector<8xf32>
    %24 = vector.shape_cast %23 : vector<8xf32> to vector<8x1xf32>
    %25 = tpu.reciprocal %24 {approx = true} : vector<8x1xf32> -> vector<8x1xf32>
    %26 = vector.broadcast %25 : vector<8x1xf32> to vector<8x8xf32>
    %27 = arith.mulf %22, %26 : vector<8x8xf32>
    %cst_10 = arith.constant dense<0.000000e+00> : vector<8x16xf32>
    %28 = tpu.matmul %27, %14, %cst_10 {dimension_numbers = #tpu.dot_dimension_numbers<[1], [0], [0], [1], [0, 0, 1, 1], [], []>} : vector<8x8xf32>, vector<8x16xf32>, vector<8x16xf32> -> vector<8x16xf32>
    %c0_11 = arith.constant 0 : index
    %c0_12 = arith.constant 0 : index
    %29 = vector.load %arg2[%c0_11, %c0_12] : memref<32x32xf32, #tpu.memory_space<vmem>>, vector<16x32xf32>
    %cst_13 = arith.constant dense<0.000000e+00> : vector<8x32xf32>
    %30 = tpu.matmul %28, %29, %cst_13 {dimension_numbers = #tpu.dot_dimension_numbers<[1], [0], [0], [1], [0, 0, 1, 1], [], []>} : vector<8x16xf32>, vector<16x32xf32>, vector<8x32xf32> -> vector<8x32xf32>
    %31 = arith.addf %11, %30 : vector<8x32xf32>
    %32 = vector.extract_strided_slice %9 {offsets = [0, 16], sizes = [8, 16], strides = [1, 1]} : vector<16x96xf32> to vector<8x16xf32>
    %33 = vector.extract_strided_slice %9 {offsets = [0, 48], sizes = [8, 16], strides = [1, 1]} : vector<16x96xf32> to vector<8x16xf32>
    %34 = vector.extract_strided_slice %9 {offsets = [0, 80], sizes = [8, 16], strides = [1, 1]} : vector<16x96xf32> to vector<8x16xf32>
    %cst_14 = arith.constant dense<0.000000e+00> : vector<8x8xf32>
    %35 = tpu.matmul %32, %33, %cst_14 {dimension_numbers = #tpu.dot_dimension_numbers<[1], [1], [0], [0], [0, 0, 1, 0], [], []>} : vector<8x16xf32>, vector<8x16xf32>, vector<8x8xf32> -> vector<8x8xf32>
    %cst_15 = arith.constant 8.000000e+00 : f32
    %36 = vector.broadcast %cst_15 : f32 to vector<8x8xf32>
    %37 = arith.mulf %35, %36 : vector<8x8xf32>
    %cst_16 = arith.constant dense<0xFF800000> : vector<8xf32>
    %38 = vector.multi_reduction <maximumf>, %37, %cst_16 [1] : vector<8x8xf32> to vector<8xf32>
    %39 = vector.shape_cast %38 : vector<8xf32> to vector<8x1xf32>
    %40 = vector.broadcast %39 : vector<8x1xf32> to vector<8x8xf32>
    %41 = arith.subf %37, %40 : vector<8x8xf32>
    %42 = math.exp %41 : vector<8x8xf32>
    %cst_17 = arith.constant dense<0.000000e+00> : vector<8xf32>
    %43 = vector.multi_reduction <add>, %42, %cst_17 [1] : vector<8x8xf32> to vector<8xf32>
    %44 = vector.shape_cast %43 : vector<8xf32> to vector<8x1xf32>
    %45 = tpu.reciprocal %44 {approx = true} : vector<8x1xf32> -> vector<8x1xf32>
    %46 = vector.broadcast %45 : vector<8x1xf32> to vector<8x8xf32>
    %47 = arith.mulf %42, %46 : vector<8x8xf32>
    %cst_18 = arith.constant dense<0.000000e+00> : vector<8x16xf32>
    %48 = tpu.matmul %47, %34, %cst_18 {dimension_numbers = #tpu.dot_dimension_numbers<[1], [0], [0], [1], [0, 0, 1, 1], [], []>} : vector<8x8xf32>, vector<8x16xf32>, vector<8x16xf32> -> vector<8x16xf32>
    %c16 = arith.constant 16 : index
    %c0_19 = arith.constant 0 : index
    %49 = vector.load %arg2[%c16, %c0_19] : memref<32x32xf32, #tpu.memory_space<vmem>>, vector<16x32xf32>
    %cst_20 = arith.constant dense<0.000000e+00> : vector<8x32xf32>
    %50 = tpu.matmul %48, %49, %cst_20 {dimension_numbers = #tpu.dot_dimension_numbers<[1], [0], [0], [1], [0, 0, 1, 1], [], []>} : vector<8x16xf32>, vector<16x32xf32>, vector<8x32xf32> -> vector<8x32xf32>
    %51 = arith.addf %31, %50 : vector<8x32xf32>
    %52 = arith.addf %10, %51 : vector<8x32xf32>
    %53 = vector.extract_strided_slice %0 {offsets = [8, 0], sizes = [8, 32], strides = [1, 1]} : vector<16x32xf32> to vector<8x32xf32>
    %cst_21 = arith.constant 0.000000e+00 : f32
    %54 = vector.broadcast %cst_21 : f32 to vector<8x32xf32>
    %55 = vector.extract_strided_slice %9 {offsets = [8, 0], sizes = [8, 16], strides = [1, 1]} : vector<16x96xf32> to vector<8x16xf32>
    %56 = vector.extract_strided_slice %9 {offsets = [8, 32], sizes = [8, 16], strides = [1, 1]} : vector<16x96xf32> to vector<8x16xf32>
    %57 = vector.extract_strided_slice %9 {offsets = [8, 64], sizes = [8, 16], strides = [1, 1]} : vector<16x96xf32> to vector<8x16xf32>
    %cst_22 = arith.constant dense<0.000000e+00> : vector<8x8xf32>
    %58 = tpu.matmul %55, %56, %cst_22 {dimension_numbers = #tpu.dot_dimension_numbers<[1], [1], [0], [0], [0, 0, 1, 0], [], []>} : vector<8x16xf32>, vector<8x16xf32>, vector<8x8xf32> -> vector<8x8xf32>
    %cst_23 = arith.constant 8.000000e+00 : f32
    %59 = vector.broadcast %cst_23 : f32 to vector<8x8xf32>
    %60 = arith.mulf %58, %59 : vector<8x8xf32>
    %cst_24 = arith.constant dense<0xFF800000> : vector<8xf32>
    %61 = vector.multi_reduction <maximumf>, %60, %cst_24 [1] : vector<8x8xf32> to vector<8xf32>
    %62 = vector.shape_cast %61 : vector<8xf32> to vector<8x1xf32>
    %63 = vector.broadcast %62 : vector<8x1xf32> to vector<8x8xf32>
    %64 = arith.subf %60, %63 : vector<8x8xf32>
    %65 = math.exp %64 : vector<8x8xf32>
    %cst_25 = arith.constant dense<0.000000e+00> : vector<8xf32>
    %66 = vector.multi_reduction <add>, %65, %cst_25 [1] : vector<8x8xf32> to vector<8xf32>
    %67 = vector.shape_cast %66 : vector<8xf32> to vector<8x1xf32>
    %68 = tpu.reciprocal %67 {approx = true} : vector<8x1xf32> -> vector<8x1xf32>
    %69 = vector.broadcast %68 : vector<8x1xf32> to vector<8x8xf32>
    %70 = arith.mulf %65, %69 : vector<8x8xf32>
    %cst_26 = arith.constant dense<0.000000e+00> : vector<8x16xf32>
    %71 = tpu.matmul %70, %57, %cst_26 {dimension_numbers = #tpu.dot_dimension_numbers<[1], [0], [0], [1], [0, 0, 1, 1], [], []>} : vector<8x8xf32>, vector<8x16xf32>, vector<8x16xf32> -> vector<8x16xf32>
    %c0_27 = arith.constant 0 : index
    %c0_28 = arith.constant 0 : index
    %72 = vector.load %arg2[%c0_27, %c0_28] : memref<32x32xf32, #tpu.memory_space<vmem>>, vector<16x32xf32>
    %cst_29 = arith.constant dense<0.000000e+00> : vector<8x32xf32>
    %73 = tpu.matmul %71, %72, %cst_29 {dimension_numbers = #tpu.dot_dimension_numbers<[1], [0], [0], [1], [0, 0, 1, 1], [], []>} : vector<8x16xf32>, vector<16x32xf32>, vector<8x32xf32> -> vector<8x32xf32>
    %74 = arith.addf %54, %73 : vector<8x32xf32>
    %75 = vector.extract_strided_slice %9 {offsets = [8, 16], sizes = [8, 16], strides = [1, 1]} : vector<16x96xf32> to vector<8x16xf32>
    %76 = vector.extract_strided_slice %9 {offsets = [8, 48], sizes = [8, 16], strides = [1, 1]} : vector<16x96xf32> to vector<8x16xf32>
    %77 = vector.extract_strided_slice %9 {offsets = [8, 80], sizes = [8, 16], strides = [1, 1]} : vector<16x96xf32> to vector<8x16xf32>
    %cst_30 = arith.constant dense<0.000000e+00> : vector<8x8xf32>
    %78 = tpu.matmul %75, %76, %cst_30 {dimension_numbers = #tpu.dot_dimension_numbers<[1], [1], [0], [0], [0, 0, 1, 0], [], []>} : vector<8x16xf32>, vector<8x16xf32>, vector<8x8xf32> -> vector<8x8xf32>
    %cst_31 = arith.constant 8.000000e+00 : f32
    %79 = vector.broadcast %cst_31 : f32 to vector<8x8xf32>
    %80 = arith.mulf %78, %79 : vector<8x8xf32>
    %cst_32 = arith.constant dense<0xFF800000> : vector<8xf32>
    %81 = vector.multi_reduction <maximumf>, %80, %cst_32 [1] : vector<8x8xf32> to vector<8xf32>
    %82 = vector.shape_cast %81 : vector<8xf32> to vector<8x1xf32>
    %83 = vector.broadcast %82 : vector<8x1xf32> to vector<8x8xf32>
    %84 = arith.subf %80, %83 : vector<8x8xf32>
    %85 = math.exp %84 : vector<8x8xf32>
    %cst_33 = arith.constant dense<0.000000e+00> : vector<8xf32>
    %86 = vector.multi_reduction <add>, %85, %cst_33 [1] : vector<8x8xf32> to vector<8xf32>
    %87 = vector.shape_cast %86 : vector<8xf32> to vector<8x1xf32>
    %88 = tpu.reciprocal %87 {approx = true} : vector<8x1xf32> -> vector<8x1xf32>
    %89 = vector.broadcast %88 : vector<8x1xf32> to vector<8x8xf32>
    %90 = arith.mulf %85, %89 : vector<8x8xf32>
    %cst_34 = arith.constant dense<0.000000e+00> : vector<8x16xf32>
    %91 = tpu.matmul %90, %77, %cst_34 {dimension_numbers = #tpu.dot_dimension_numbers<[1], [0], [0], [1], [0, 0, 1, 1], [], []>} : vector<8x8xf32>, vector<8x16xf32>, vector<8x16xf32> -> vector<8x16xf32>
    %c16_35 = arith.constant 16 : index
    %c0_36 = arith.constant 0 : index
    %92 = vector.load %arg2[%c16_35, %c0_36] : memref<32x32xf32, #tpu.memory_space<vmem>>, vector<16x32xf32>
    %cst_37 = arith.constant dense<0.000000e+00> : vector<8x32xf32>
    %93 = tpu.matmul %91, %92, %cst_37 {dimension_numbers = #tpu.dot_dimension_numbers<[1], [0], [0], [1], [0, 0, 1, 1], [], []>} : vector<8x16xf32>, vector<16x32xf32>, vector<8x32xf32> -> vector<8x32xf32>
    %94 = arith.addf %74, %93 : vector<8x32xf32>
    %95 = arith.addf %53, %94 : vector<8x32xf32>
    %96 = tpu.concatenate %52, %95 in 0 : vector<8x32xf32>, vector<8x32xf32> -> vector<16x32xf32>
    %cst_38 = arith.constant dense<0.000000e+00> : vector<16xf32>
    %97 = vector.multi_reduction <add>, %96, %cst_38 [1] : vector<16x32xf32> to vector<16xf32>
    %98 = vector.shape_cast %97 : vector<16xf32> to vector<16x1xf32>
    %cst_39 = arith.constant 3.200000e+01 : f32
    %99 = vector.broadcast %cst_39 : f32 to vector<16x1xf32>
    %100 = arith.divf %98, %99 : vector<16x1xf32>
    %101 = vector.broadcast %100 : vector<16x1xf32> to vector<16x32xf32>
    %102 = arith.subf %96, %101 : vector<16x32xf32>
    %103 = arith.mulf %102, %102 : vector<16x32xf32>
    %cst_40 = arith.constant dense<0.000000e+00> : vector<16xf32>
    %104 = vector.multi_reduction <add>, %103, %cst_40 [1] : vector<16x32xf32> to vector<16xf32>
    %105 = vector.shape_cast %104 : vector<16xf32> to vector<16x1xf32>
    %cst_41 = arith.constant 3.200000e+01 : f32
    %106 = vector.broadcast %cst_41 : f32 to vector<16x1xf32>
    %107 = arith.divf %105, %106 : vector<16x1xf32>
    %108 = vector.broadcast %100 : vector<16x1xf32> to vector<16x32xf32>
    %109 = arith.subf %96, %108 : vector<16x32xf32>
    %cst_42 = arith.constant 9.99999974E-6 : f32
    %110 = vector.broadcast %cst_42 : f32 to vector<16x1xf32>
    %111 = arith.addf %107, %110 : vector<16x1xf32>
    %112 = math.rsqrt %111 : vector<16x1xf32>
    %113 = vector.broadcast %112 : vector<16x1xf32> to vector<16x32xf32>
    %114 = arith.mulf %109, %113 : vector<16x32xf32>
    %115 = vector.broadcast %2 : vector<1x32xf32> to vector<16x32xf32>
    %116 = arith.mulf %114, %115 : vector<16x32xf32>
    %117 = vector.broadcast %3 : vector<1x32xf32> to vector<16x32xf32>
    %118 = arith.addf %116, %117 : vector<16x32xf32>
    %c0_43 = arith.constant 0 : index
    %c0_44 = arith.constant 0 : index
    %119 = vector.load %arg3[%c0_43, %c0_44] : memref<32x64xf32, #tpu.memory_space<vmem>>, vector<32x64xf32>
    %cst_45 = arith.constant dense<0.000000e+00> : vector<16x64xf32>
    %120 = tpu.matmul %118, %119, %cst_45 {dimension_numbers = #tpu.dot_dimension_numbers<[1], [0], [0], [1], [0, 0, 1, 1], [], []>} : vector<16x32xf32>, vector<32x64xf32>, vector<16x64xf32> -> vector<16x64xf32>
    %121 = vector.broadcast %4 : vector<1x64xf32> to vector<16x64xf32>
    %122 = arith.addf %120, %121 : vector<16x64xf32>
    %cst_46 = arith.constant 5.000000e-01 : f32
    %123 = vector.broadcast %cst_46 : f32 to vector<16x64xf32>
    %124 = arith.mulf %123, %122 : vector<16x64xf32>
    %cst_47 = arith.constant 0.707106769 : f32
    %125 = vector.broadcast %cst_47 : f32 to vector<16x64xf32>
    %126 = arith.mulf %122, %125 : vector<16x64xf32>
    %127 = math.erf %126 : vector<16x64xf32>
    %cst_48 = arith.constant 1.000000e+00 : f32
    %128 = vector.broadcast %cst_48 : f32 to vector<16x64xf32>
    %129 = arith.addf %128, %127 : vector<16x64xf32>
    %130 = arith.mulf %124, %129 : vector<16x64xf32>
    %c0_49 = arith.constant 0 : index
    %c0_50 = arith.constant 0 : index
    %131 = vector.load %arg4[%c0_49, %c0_50] : memref<64x32xf32, #tpu.memory_space<vmem>>, vector<64x32xf32>
    %cst_51 = arith.constant dense<0.000000e+00> : vector<16x32xf32>
    %132 = tpu.matmul %130, %131, %cst_51 {dimension_numbers = #tpu.dot_dimension_numbers<[1], [0], [0], [1], [0, 0, 1, 1], [], []>} : vector<16x64xf32>, vector<64x32xf32>, vector<16x32xf32> -> vector<16x32xf32>
    %133 = vector.broadcast %5 : vector<1x32xf32> to vector<16x32xf32>
    %134 = arith.addf %132, %133 : vector<16x32xf32>
    %135 = arith.addf %118, %134 : vector<16x32xf32>
    %cst_52 = arith.constant dense<0.000000e+00> : vector<16xf32>
    %136 = vector.multi_reduction <add>, %135, %cst_52 [1] : vector<16x32xf32> to vector<16xf32>
    %137 = vector.shape_cast %136 : vector<16xf32> to vector<16x1xf32>
    %cst_53 = arith.constant 3.200000e+01 : f32
    %138 = vector.broadcast %cst_53 : f32 to vector<16x1xf32>
    %139 = arith.divf %137, %138 : vector<16x1xf32>
    %140 = vector.broadcast %139 : vector<16x1xf32> to vector<16x32xf32>
    %141 = arith.subf %135, %140 : vector<16x32xf32>
    %142 = arith.mulf %141, %141 : vector<16x32xf32>
    %cst_54 = arith.constant dense<0.000000e+00> : vector<16xf32>
    %143 = vector.multi_reduction <add>, %142, %cst_54 [1] : vector<16x32xf32> to vector<16xf32>
    %144 = vector.shape_cast %143 : vector<16xf32> to vector<16x1xf32>
    %cst_55 = arith.constant 3.200000e+01 : f32
    %145 = vector.broadcast %cst_55 : f32 to vector<16x1xf32>
    %146 = arith.divf %144, %145 : vector<16x1xf32>
    %147 = vector.broadcast %139 : vector<16x1xf32> to vector<16x32xf32>
    %148 = arith.subf %135, %147 : vector<16x32xf32>
    %cst_56 = arith.constant 9.99999974E-6 : f32
    %149 = vector.broadcast %cst_56 : f32 to vector<16x1xf32>
    %150 = arith.addf %146, %149 : vector<16x1xf32>
    %151 = math.rsqrt %150 : vector<16x1xf32>
    %152 = vector.broadcast %151 : vector<16x1xf32> to vector<16x32xf32>
    %153 = arith.mulf %148, %152 : vector<16x32xf32>
    %154 = vector.broadcast %6 : vector<1x32xf32> to vector<16x32xf32>
    %155 = arith.mulf %153, %154 : vector<16x32xf32>
    %156 = vector.broadcast %7 : vector<1x32xf32> to vector<16x32xf32>
    %157 = arith.addf %155, %156 : vector<16x32xf32>
    %c0_57 = arith.constant 0 : index
    %c0_58 = arith.constant 0 : index
    %158 = vector.load %arg6[%c0_57, %c0_58] : memref<16x32xf32, #tpu.memory_space<vmem>>, vector<16x32xf32>
    tpu.vector_store %arg6[%c0_57, %c0_58], %157 {strides = array<i32>} : memref<16x32xf32, #tpu.memory_space<vmem>>, vector<16x32xf32>,
    return
  }
}

</mosaic_0001>

<llo_original>
// kernel: tpu_custom_call.1
$region0: #{tpu_custom_call.1}
  #allocation0 [shape = 'u32[]', space=smem, size = 0x4, offset = 0x4, fixed_abs, tag = 'smem constant byte address 0x4 - core index']
  #allocation1 [shape = 'u32[144,128]{1,0:T(1,128)}', space=vmem, size = 0x12000, scoped, tag = 'internal scratch']
  %s0 = inlined_call_operand.hbm [shape: f32[16,32], index: 0, kind: input, shape index: {}]
  %s1 = inlined_call_operand.vmem [shape: f32[32,96], index: 1, kind: input, shape index: {}]
  %s2 = inlined_call_operand.vmem [shape: f32[32,32], index: 2, kind: input, shape index: {}]
  %s3 = inlined_call_operand.vmem [shape: f32[32,64], index: 3, kind: input, shape index: {}]
  %s4 = inlined_call_operand.vmem [shape: f32[64,32], index: 4, kind: input, shape index: {}]
  %s5 = inlined_call_operand.vmem [shape: f32[8,64], index: 5, kind: input, shape index: {}]
  %s6 = inlined_call_operand.hbm [shape: f32[16,32], index: 6, kind: output, shape index: {}]
  %s7 = sld [smem:[#allocation0]]
  $region38: #{tpu_custom_call.1} parent=0
    _
  %s9 = ssub.s32 1, %s7
  %s10 = scalar_select 0, %s9, %s7
  $region1: #{tpu_custom_call.1} parent=0
    #allocation2 [shape = 'u8[8192]{0}', space=vmem, size = 0x2000, scoped, tag = 'input window, operand 0, single buffered']
    #allocation3 [shape = 's32[1]{0}', space=sflag, size = 0x4, scoped, tag = 'scoped memory for tpu_custom_call.1']
    #allocation4 [shape = 's32[1]{0}', space=sflag, size = 0x4, scoped, tag = 'scoped memory for tpu_custom_call.1']
    #allocation5 [shape = 'u8[8192]{0}', space=vmem, size = 0x2000, scoped, tag = 'output window, operand 0, single buffered']
    %11 = vsyncpa [#allocation3], 0
    %12 = vsyncpa [#allocation4], 0
    // Predicated region
    $region2: #{tpu_custom_call.1} parent=1 // pred_check
      _
    $region3: #{tpu_custom_call.1} parent=1 // pred_check_branch
      %14 = sbr.rel (0) target = $region5
    $region4: #{tpu_custom_call.1} parent=1 // pred_region
      %s16 = ssub.s32 256, 256
      %17 = vsyncadd [#allocation3], %s16
      %s18 = sshll.u32 [#allocation2], 4
      %s19 = int_to_ptr.vmem [resolvable:$true] %s18
      %24 = dma.hbm_to_vmem [thread:$0]  %s0, 256, %s19, [#allocation3], 128, 128, 8
    $region5: #{tpu_custom_call.1} parent=1 // pred_fallthru
      _
    // Predicated region
    $region6: #{tpu_custom_call.1} parent=1 // pred_check
      _
    $region7: #{tpu_custom_call.1} parent=1 // pred_check_branch
      %26 = sbr.rel (0) target = $region9
    $region8: #{tpu_custom_call.1} parent=1 // pred_region
      _
    $region9: #{tpu_custom_call.1} parent=1 // pred_fallthru
      _
    // Predicated region
    $region10: #{tpu_custom_call.1} parent=1 // pred_check
      _
    $region11: #{tpu_custom_call.1} parent=1 // pred_check_branch
      %28 = sbr.rel (0) target = $region13
    $region12: #{tpu_custom_call.1} parent=1 // pred_region
      _
    $region13: #{tpu_custom_call.1} parent=1 // pred_fallthru
      _
    // Predicated region
    $region14: #{tpu_custom_call.1} parent=1 // pred_check
      _
    $region15: #{tpu_custom_call.1} parent=1 // pred_check_branch
      %30 = sbr.rel (0) target = $region17
    $region16: #{tpu_custom_call.1} parent=1 // pred_region
      _
    $region17: #{tpu_custom_call.1} parent=1 // pred_fallthru
      _
    // Predicated region
    $region18: #{tpu_custom_call.1} parent=1 // pred_check
      _
    $region19: #{tpu_custom_call.1} parent=1 // pred_check_branch
      %32 = sbr.rel (0) target = $region21
    $region20: #{tpu_custom_call.1} parent=1 // pred_region
      _
    $region21: #{tpu_custom_call.1} parent=1 // pred_fallthru
      _
    // Predicated region
    $region22: #{tpu_custom_call.1} parent=1 // pred_check
      _
    $region23: #{tpu_custom_call.1} parent=1 // pred_check_branch
      %34 = sbr.rel (0) target = $region25
    $region24: #{tpu_custom_call.1} parent=1 // pred_region
      _
    $region25: #{tpu_custom_call.1} parent=1 // pred_fallthru
      _
    // Predicated region
    $region26: #{tpu_custom_call.1} parent=1 // pred_check
      _
    $region27: #{tpu_custom_call.1} parent=1 // pred_check_branch
      %36 = sbr.rel (0) target = $region29
    $region28: #{tpu_custom_call.1} parent=1 // pred_region
      %37 = dma.done [#allocation3], 256
    $region29: #{tpu_custom_call.1} parent=1 // pred_fallthru
      _
    %v38 = vld [vmem:[#allocation2] sm:$0xff]
    %v39 = vld [vmem:[#allocation2 + $0x8] sm:$0xff]
    %v40 = vld [vmem:[%s5] sm:$0xff]
    %v41 = vld [vmem:[%s1] sm:$0xff]
    %v42 = vld [vmem:[%s1 + $0x8] sm:$0xff]
    %v43 = vld [vmem:[%s1 + $0x10] sm:$0xff]
    %v44 = vld [vmem:[%s1 + $0x18] sm:$0xff]
    %vm45 = vcmask 261120
    %v47 = vsel %vm45, %v38, 0
    %v50 = vsel %vm45, %v39, 0
    %52 = vmatprep.subr.mxu0 0.0
    %53 = vmatpush1.msra.mxu0 %v41
    %54 = vmatprep.subr.mxu0 0.0
    %55 = vmatpush1.msra.mxu0 %v42
    %56 = vmatprep.subr.mxu0 0.0
    %57 = vmatpush1.msra.mxu0 %v43
    %58 = vmatprep.subr.mxu0 0.0
    %59 = vmatpush1.msra.mxu0 %v44
    %60 = vmatprep.subr.mxu0 0.0
    %61 = vmatpush1.msra.mxu0 0.0
    %62 = vmatprep.subr.mxu0 0.0
    %63 = vmatpush1.msra.mxu0 0.0
    %64 = vmatprep.subr.mxu0 0.0
    %65 = vmatpush1.msra.mxu0 0.0
    %66 = vmatprep.subr.mxu0 0.0
    %67 = vmatpush1.msra.mxu0 0.0
    %68 = vmatprep.subr.mxu0 0.0
    %69 = vmatpush1.msra.mxu0 0.0
    %70 = vmatprep.subr.mxu0 0.0
    %71 = vmatpush1.msra.mxu0 0.0
    %72 = vmatprep.subr.mxu0 0.0
    %73 = vmatpush1.msra.mxu0 0.0
    %74 = vmatprep.subr.mxu0 0.0
    %75 = vmatpush1.msra.mxu0 0.0
    %76 = vmatprep.subr.mxu0 0.0
    %77 = vmatpush1.msra.mxu0 0.0
    %78 = vmatprep.subr.mxu0 0.0
    %79 = vmatpush1.msra.mxu0 0.0
    %80 = vmatprep.subr.mxu0 0.0
    %81 = vmatpush1.msra.mxu0 0.0
    %82 = vmatprep.subr.mxu0 0.0
    %83 = vmatpush1.msra.mxu0 0.0
    %84 = vmatprep.subr.mxu0 0.0
    %85 = vmatpush1.msra.mxu0 0.0
    %86 = vmatprep.subr.mxu0 0.0
    %87 = vmatpush1.msra.mxu0 0.0
    %88 = vmatprep.subr.mxu0 0.0
    %89 = vmatpush1.msra.mxu0 0.0
    %90 = vmatprep.subr.mxu0 0.0
    %91 = vmatpush1.msra.mxu0 0.0
    %92 = vmatprep.subr.mxu0 0.0
    %93 = vmatpush1.msra.mxu0 0.0
    %94 = vmatprep.subr.mxu0 0.0
    %95 = vmatpush1.msra.mxu0 0.0
    %96 = vmatprep.subr.mxu0 0.0
    %97 = vmatpush1.msra.mxu0 0.0
    %98 = vmatprep.subr.mxu0 0.0
    %99 = vmatpush1.msra.mxu0 0.0
    %100 = vmatprep.subr.mxu0 0.0
    %101 = vmatpush1.msra.mxu0 0.0
    %102 = vmatprep.subr.mxu0 0.0
    %103 = vmatpush1.msra.mxu0 0.0
    %104 = vmatprep.subr.mxu0 0.0
    %105 = vmatpush1.msra.mxu0 0.0
    %106 = vmatprep.subr.mxu0 0.0
    %107 = vmatpush1.msra.mxu0 0.0
    %108 = vmatprep.subr.mxu0 0.0
    %109 = vmatpush1.msra.mxu0 0.0
    %110 = vmatprep.subr.mxu0 0.0
    %111 = vmatpush1.msra.mxu0 0.0
    %112 = vmatprep.subr.mxu0 0.0
    %113 = vmatpush1.msra.mxu0 0.0
    %114 = vmatprep.subr.mxu0 0.0
    %115 = vmatpush1.msra.mxu0 0.0
    %116 = vmatprep.mubr.f32.mxu0 0.0
    %117 = vmatmul.mubr.f32.gmra.mrb[0].mxu0 %v47
    %v118 = vpop.f32.mrb[0].mxu0
    %v119 = vadd.f32 0.0, %v118
    %v120 = vpop.f32.mrb[0].mxu0
    %121 = vmatprep.mubr.f32.mxu0 0.0
    %122 = vmatmul.mubr.f32.gmra.mrb[0].mxu0 %v50
    %v123 = vpop.f32.mrb[0].mxu0
    %v124 = vadd.f32 0.0, %v123
    %v125 = vpop.f32.mrb[0].mxu0
    %126 = vdwg.mxu0
    %128 = vrot.lane.b32.xlu0 %v119, 96
    %v129 = vpop.permute.xlu0 %128
    %vm130 = vcmask 130048
    %v131 = vsel %vm130, %v119, 0
    %v133 = vsel %vm130, %v129, 0
    %135 = vmatprep.subr.mxu0 0.0
    %136 = vmatpush1.xpose.msra.mxu0 %v133
    %137 = vmatprep.subr.mxu0 0.0
    %138 = vmatpush1.xpose.msra.mxu0 0.0
    %139 = vmatprep.subr.mxu0 0.0
    %140 = vmatpush1.xpose.msra.mxu0 0.0
    %141 = vmatprep.subr.mxu0 0.0
    %142 = vmatpush1.xpose.msra.mxu0 0.0
    %143 = vmatprep.subr.mxu0 0.0
    %144 = vmatpush1.xpose.msra.mxu0 0.0
    %145 = vmatprep.subr.mxu0 0.0
    %146 = vmatpush1.xpose.msra.mxu0 0.0
    %147 = vmatprep.subr.mxu0 0.0
    %148 = vmatpush1.xpose.msra.mxu0 0.0
    %149 = vmatprep.subr.mxu0 0.0
    %150 = vmatpush1.xpose.msra.mxu0 0.0
    %151 = vmatprep.subr.mxu0 0.0
    %152 = vmatpush1.xpose.msra.mxu0 0.0
    %153 = vmatprep.subr.mxu0 0.0
    %154 = vmatpush1.xpose.msra.mxu0 0.0
    %155 = vmatprep.subr.mxu0 0.0
    %156 = vmatpush1.xpose.msra.mxu0 0.0
    %157 = vmatprep.subr.mxu0 0.0
    %158 = vmatpush1.xpose.msra.mxu0 0.0
    %159 = vmatprep.subr.mxu0 0.0
    %160 = vmatpush1.xpose.msra.mxu0 0.0
    %161 = vmatprep.subr.mxu0 0.0
    %162 = vmatpush1.xpose.msra.mxu0 0.0
    %163 = vmatprep.subr.mxu0 0.0
    %164 = vmatpush1.xpose.msra.mxu0 0.0
    %165 = vmatprep.subr.mxu0 0.0
    %166 = vmatpush1.xpose.msra.mxu0 0.0
    %167 = vmatprep.subr.mxu0 0.0
    %168 = vmatpush1.xpose.msra.mxu0 0.0
    %169 = vmatprep.subr.mxu0 0.0
    %170 = vmatpush1.xpose.msra.mxu0 0.0
    %171 = vmatprep.subr.mxu0 0.0
    %172 = vmatpush1.xpose.msra.mxu0 0.0
    %173 = vmatprep.subr.mxu0 0.0
    %174 = vmatpush1.xpose.msra.mxu0 0.0
    %175 = vmatprep.subr.mxu0 0.0
    %176 = vmatpush1.xpose.msra.mxu0 0.0
    %177 = vmatprep.subr.mxu0 0.0
    %178 = vmatpush1.xpose.msra.mxu0 0.0
    %179 = vmatprep.subr.mxu0 0.0
    %180 = vmatpush1.xpose.msra.mxu0 0.0
    %181 = vmatprep.subr.mxu0 0.0
    %182 = vmatpush1.xpose.msra.mxu0 0.0
    %183 = vmatprep.subr.mxu0 0.0
    %184 = vmatpush1.xpose.msra.mxu0 0.0
    %185 = vmatprep.subr.mxu0 0.0
    %186 = vmatpush1.xpose.msra.mxu0 0.0
    %187 = vmatprep.subr.mxu0 0.0
    %188 = vmatpush1.xpose.msra.mxu0 0.0
    %189 = vmatprep.subr.mxu0 0.0
    %190 = vmatpush1.xpose.msra.mxu0 0.0
    %191 = vmatprep.subr.mxu0 0.0
    %192 = vmatpush1.xpose.msra.mxu0 0.0
    %193 = vmatprep.subr.mxu0 0.0
    %194 = vmatpush1.xpose.msra.mxu0 0.0
    %195 = vmatprep.subr.mxu0 0.0
    %196 = vmatpush1.xpose.msra.mxu0 0.0
    %197 = vmatprep.subr.mxu0 0.0
    %198 = vmatpush1.xpose.msra.mxu0 0.0
    %199 = vmatprep.mubr.f32.mxu0 0.0
    %200 = vmatmul.mubr.f32.gmra.mrb[0].mxu0 %v131
    %v201 = vpop.f32.mrb[0].mxu0
    %v202 = vadd.f32 0.0, %v201
    %v203 = vpop.f32.mrb[0].mxu0
    %204 = vdwg.mxu0
    %v205 = vmul.f32 %v202, 8.0
    %vm206 = vcmask 64512
    %v207 = vsel %vm206, %v205, -inf
    %208 = vmax.xlane.f32.xlu0 %v207
    %v209 = vpop.xlane.xlu0 %208
    %v210 = vsub.f32 %v205, %v209
    %v211 = vmul.f32 %v210, 1.442695
    %v212 = vpow.pop %v211
    %v213 = vsel %vm206, %v212, 0.0
    %214 = vadd.xlane.f32.xlu0 %v213
    %v215 = vpop.xlane.xlu0 %214
    %v216 = vrcp.pop %v215
    %v217 = vmul.f32 %v212, %v216
    %218 = vrot.lane.b32.xlu0 %v119, 64
    %v219 = vpop.permute.xlu0 %218
    %v222 = vsel %vm206, %v217, 0
    %224 = vmatprep.subr.mxu0 0.0
    %225 = vmatpush1.msra.mxu0 %v219
    %226 = vmatprep.subr.mxu0 0.0
    %227 = vmatpush1.msra.mxu0 0.0
    %228 = vmatprep.subr.mxu0 0.0
    %229 = vmatpush1.msra.mxu0 0.0
    %230 = vmatprep.subr.mxu0 0.0
    %231 = vmatpush1.msra.mxu0 0.0
    %232 = vmatprep.subr.mxu0 0.0
    %233 = vmatpush1.msra.mxu0 0.0
    %234 = vmatprep.subr.mxu0 0.0
    %235 = vmatpush1.msra.mxu0 0.0
    %236 = vmatprep.subr.mxu0 0.0
    %237 = vmatpush1.msra.mxu0 0.0
    %238 = vmatprep.subr.mxu0 0.0
    %239 = vmatpush1.msra.mxu0 0.0
    %240 = vmatprep.subr.mxu0 0.0
    %241 = vmatpush1.msra.mxu0 0.0
    %242 = vmatprep.subr.mxu0 0.0
    %243 = vmatpush1.msra.mxu0 0.0
    %244 = vmatprep.subr.mxu0 0.0
    %245 = vmatpush1.msra.mxu0 0.0
    %246 = vmatprep.subr.mxu0 0.0
    %247 = vmatpush1.msra.mxu0 0.0
    %248 = vmatprep.subr.mxu0 0.0
    %249 = vmatpush1.msra.mxu0 0.0
    %250 = vmatprep.subr.mxu0 0.0
    %251 = vmatpush1.msra.mxu0 0.0
    %252 = vmatprep.subr.mxu0 0.0
    %253 = vmatpush1.msra.mxu0 0.0
    %254 = vmatprep.subr.mxu0 0.0
    %255 = vmatpush1.msra.mxu0 0.0
    %256 = vmatprep.subr.mxu0 0.0
    %257 = vmatpush1.msra.mxu0 0.0
    %258 = vmatprep.subr.mxu0 0.0
    %259 = vmatpush1.msra.mxu0 0.0
    %260 = vmatprep.subr.mxu0 0.0
    %261 = vmatpush1.msra.mxu0 0.0
    %262 = vmatprep.subr.mxu0 0.0
    %263 = vmatpush1.msra.mxu0 0.0
    %264 = vmatprep.subr.mxu0 0.0
    %265 = vmatpush1.msra.mxu0 0.0
    %266 = vmatprep.subr.mxu0 0.0
    %267 = vmatpush1.msra.mxu0 0.0
    %268 = vmatprep.subr.mxu0 0.0
    %269 = vmatpush1.msra.mxu0 0.0
    %270 = vmatprep.subr.mxu0 0.0
    %271 = vmatpush1.msra.mxu0 0.0
    %272 = vmatprep.subr.mxu0 0.0
    %273 = vmatpush1.msra.mxu0 0.0
    %274 = vmatprep.subr.mxu0 0.0
    %275 = vmatpush1.msra.mxu0 0.0
    %276 = vmatprep.subr.mxu0 0.0
    %277 = vmatpush1.msra.mxu0 0.0
    %278 = vmatprep.subr.mxu0 0.0
    %279 = vmatpush1.msra.mxu0 0.0
    %280 = vmatprep.subr.mxu0 0.0
    %281 = vmatpush1.msra.mxu0 0.0
    %282 = vmatprep.subr.mxu0 0.0
    %283 = vmatpush1.msra.mxu0 0.0
    %284 = vmatprep.subr.mxu0 0.0
    %285 = vmatpush1.msra.mxu0 0.0
    %286 = vmatprep.subr.mxu0 0.0
    %287 = vmatpush1.msra.mxu0 0.0
    %288 = vmatprep.mubr.f32.mxu0 0.0
    %289 = vmatmul.mubr.f32.gmra.mrb[0].mxu0 %v222
    %v290 = vpop.f32.mrb[0].mxu0
    %v291 = vadd.f32 0.0, %v290
    %v292 = vpop.f32.mrb[0].mxu0
    %293 = vdwg.mxu0
    %v294 = vld [vmem:[%s2] sm:$0xff]
    %v295 = vld [vmem:[%s2 + $0x8] sm:$0xff]
    %296 = vrot.lane.b32.xlu0 %v119, 112
    %v297 = vpop.permute.xlu0 %296
    %298 = vrot.lane.b32.xlu0 %v119, 80
    %v299 = vpop.permute.xlu0 %298
    %v300 = vsel %vm130, %v297, 0
    %v302 = vsel %vm130, %v299, 0
    %304 = vmatprep.subr.mxu0 0.0
    %305 = vmatpush1.xpose.msra.mxu0 %v302
    %306 = vmatprep.subr.mxu0 0.0
    %307 = vmatpush1.xpose.msra.mxu0 0.0
    %308 = vmatprep.subr.mxu0 0.0
    %309 = vmatpush1.xpose.msra.mxu0 0.0
    %310 = vmatprep.subr.mxu0 0.0
    %311 = vmatpush1.xpose.msra.mxu0 0.0
    %312 = vmatprep.subr.mxu0 0.0
    %313 = vmatpush1.xpose.msra.mxu0 0.0
    %314 = vmatprep.subr.mxu0 0.0
    %315 = vmatpush1.xpose.msra.mxu0 0.0
    %316 = vmatprep.subr.mxu0 0.0
    %317 = vmatpush1.xpose.msra.mxu0 0.0
    %318 = vmatprep.subr.mxu0 0.0
    %319 = vmatpush1.xpose.msra.mxu0 0.0
    %320 = vmatprep.subr.mxu0 0.0
    %321 = vmatpush1.xpose.msra.mxu0 0.0
    %322 = vmatprep.subr.mxu0 0.0
    %323 = vmatpush1.xpose.msra.mxu0 0.0
    %324 = vmatprep.subr.mxu0 0.0
    %325 = vmatpush1.xpose.msra.mxu0 0.0
    %326 = vmatprep.subr.mxu0 0.0
    %327 = vmatpush1.xpose.msra.mxu0 0.0
    %328 = vmatprep.subr.mxu0 0.0
    %329 = vmatpush1.xpose.msra.mxu0 0.0
    %330 = vmatprep.subr.mxu0 0.0
    %331 = vmatpush1.xpose.msra.mxu0 0.0
    %332 = vmatprep.subr.mxu0 0.0
    %333 = vmatpush1.xpose.msra.mxu0 0.0
    %334 = vmatprep.subr.mxu0 0.0
    %335 = vmatpush1.xpose.msra.mxu0 0.0
    %336 = vmatprep.subr.mxu0 0.0
    %337 = vmatpush1.xpose.msra.mxu0 0.0
    %338 = vmatprep.subr.mxu0 0.0
    %339 = vmatpush1.xpose.msra.mxu0 0.0
    %340 = vmatprep.subr.mxu0 0.0
    %341 = vmatpush1.xpose.msra.mxu0 0.0
    %342 = vmatprep.subr.mxu0 0.0
    %343 = vmatpush1.xpose.msra.mxu0 0.0
    %344 = vmatprep.subr.mxu0 0.0
    %345 = vmatpush1.xpose.msra.mxu0 0.0
    %346 = vmatprep.subr.mxu0 0.0
    %347 = vmatpush1.xpose.msra.mxu0 0.0
    %348 = vmatprep.subr.mxu0 0.0
    %349 = vmatpush1.xpose.msra.mxu0 0.0
    %350 = vmatprep.subr.mxu0 0.0
    %351 = vmatpush1.xpose.msra.mxu0 0.0
    %352 = vmatprep.subr.mxu0 0.0
    %353 = vmatpush1.xpose.msra.mxu0 0.0
    %354 = vmatprep.subr.mxu0 0.0
    %355 = vmatpush1.xpose.msra.mxu0 0.0
    %356 = vmatprep.subr.mxu0 0.0
    %357 = vmatpush1.xpose.msra.mxu0 0.0
    %358 = vmatprep.subr.mxu0 0.0
    %359 = vmatpush1.xpose.msra.mxu0 0.0
    %360 = vmatprep.subr.mxu0 0.0
    %361 = vmatpush1.xpose.msra.mxu0 0.0
    %362 = vmatprep.subr.mxu0 0.0
    %363 = vmatpush1.xpose.msra.mxu0 0.0
    %364 = vmatprep.subr.mxu0 0.0
    %365 = vmatpush1.xpose.msra.mxu0 0.0
    %366 = vmatprep.subr.mxu0 0.0
    %367 = vmatpush1.xpose.msra.mxu0 0.0
    %368 = vmatprep.mubr.f32.mxu0 0.0
    %369 = vmatmul.mubr.f32.gmra.mrb[0].mxu0 %v300
    %v370 = vpop.f32.mrb[0].mxu0
    %v371 = vadd.f32 0.0, %v370
    %v372 = vpop.f32.mrb[0].mxu0
    %373 = vdwg.mxu0
    %v374 = vmul.f32 %v371, 8.0
    %v375 = vsel %vm206, %v374, -inf
    %376 = vmax.xlane.f32.xlu0 %v375
    %v377 = vpop.xlane.xlu0 %376
    %v378 = vsub.f32 %v374, %v377
    %v379 = vmul.f32 %v378, 1.442695
    %v380 = vpow.pop %v379
    %v381 = vsel %vm206, %v380, 0.0
    %382 = vadd.xlane.f32.xlu0 %v381
    %v383 = vpop.xlane.xlu0 %382
    %v384 = vrcp.pop %v383
    %v385 = vmul.f32 %v380, %v384
    %386 = vrot.lane.b32.xlu0 %v119, 48
    %v387 = vpop.permute.xlu0 %386
    %v390 = vsel %vm206, %v385, 0
    %392 = vmatprep.subr.mxu0 0.0
    %393 = vmatpush1.msra.mxu0 %v387
    %394 = vmatprep.subr.mxu0 0.0
    %395 = vmatpush1.msra.mxu0 0.0
    %396 = vmatprep.subr.mxu0 0.0
    %397 = vmatpush1.msra.mxu0 0.0
    %398 = vmatprep.subr.mxu0 0.0
    %399 = vmatpush1.msra.mxu0 0.0
    %400 = vmatprep.subr.mxu0 0.0
    %401 = vmatpush1.msra.mxu0 0.0
    %402 = vmatprep.subr.mxu0 0.0
    %403 = vmatpush1.msra.mxu0 0.0
    %404 = vmatprep.subr.mxu0 0.0
    %405 = vmatpush1.msra.mxu0 0.0
    %406 = vmatprep.subr.mxu0 0.0
    %407 = vmatpush1.msra.mxu0 0.0
    %408 = vmatprep.subr.mxu0 0.0
    %409 = vmatpush1.msra.mxu0 0.0
    %410 = vmatprep.subr.mxu0 0.0
    %411 = vmatpush1.msra.mxu0 0.0
    %412 = vmatprep.subr.mxu0 0.0
    %413 = vmatpush1.msra.mxu0 0.0
    %414 = vmatprep.subr.mxu0 0.0
    %415 = vmatpush1.msra.mxu0 0.0
    %416 = vmatprep.subr.mxu0 0.0
    %417 = vmatpush1.msra.mxu0 0.0
    %418 = vmatprep.subr.mxu0 0.0
    %419 = vmatpush1.msra.mxu0 0.0
    %420 = vmatprep.subr.mxu0 0.0
    %421 = vmatpush1.msra.mxu0 0.0
    %422 = vmatprep.subr.mxu0 0.0
    %423 = vmatpush1.msra.mxu0 0.0
    %424 = vmatprep.subr.mxu0 0.0
    %425 = vmatpush1.msra.mxu0 0.0
    %426 = vmatprep.subr.mxu0 0.0
    %427 = vmatpush1.msra.mxu0 0.0
    %428 = vmatprep.subr.mxu0 0.0
    %429 = vmatpush1.msra.mxu0 0.0
    %430 = vmatprep.subr.mxu0 0.0
    %431 = vmatpush1.msra.mxu0 0.0
    %432 = vmatprep.subr.mxu0 0.0
    %433 = vmatpush1.msra.mxu0 0.0
    %434 = vmatprep.subr.mxu0 0.0
    %435 = vmatpush1.msra.mxu0 0.0
    %436 = vmatprep.subr.mxu0 0.0
    %437 = vmatpush1.msra.mxu0 0.0
    %438 = vmatprep.subr.mxu0 0.0
    %439 = vmatpush1.msra.mxu0 0.0
    %440 = vmatprep.subr.mxu0 0.0
    %441 = vmatpush1.msra.mxu0 0.0
    %442 = vmatprep.subr.mxu0 0.0
    %443 = vmatpush1.msra.mxu0 0.0
    %444 = vmatprep.subr.mxu0 0.0
    %445 = vmatpush1.msra.mxu0 0.0
    %446 = vmatprep.subr.mxu0 0.0
    %447 = vmatpush1.msra.mxu0 0.0
    %448 = vmatprep.subr.mxu0 0.0
    %449 = vmatpush1.msra.mxu0 0.0
    %450 = vmatprep.subr.mxu0 0.0
    %451 = vmatpush1.msra.mxu0 0.0
    %452 = vmatprep.subr.mxu0 0.0
    %453 = vmatpush1.msra.mxu0 0.0
    %454 = vmatprep.subr.mxu0 0.0
    %455 = vmatpush1.msra.mxu0 0.0
    %456 = vmatprep.mubr.f32.mxu0 0.0
    %457 = vmatmul.mubr.f32.gmra.mrb[0].mxu0 %v390
    %v458 = vpop.f32.mrb[0].mxu0
    %v459 = vadd.f32 0.0, %v458
    %v460 = vpop.f32.mrb[0].mxu0
    %461 = vdwg.mxu0
    %v462 = vld [vmem:[%s2 + $0x10] sm:$0xff]
    %v463 = vld [vmem:[%s2 + $0x18] sm:$0xff]
    %v465 = vsel %vm130, %v459, 0
    %467 = vmatprep.subr.mxu0 0.0
    %468 = vmatpush1.msra.mxu0 %v462
    %469 = vmatprep.subr.mxu0 0.0
    %470 = vmatpush1.msra.mxu0 %v463
    %471 = vmatprep.subr.mxu0 0.0
    %472 = vmatpush1.msra.mxu0 0.0
    %473 = vmatprep.subr.mxu0 0.0
    %474 = vmatpush1.msra.mxu0 0.0
    %475 = vmatprep.subr.mxu0 0.0
    %476 = vmatpush1.msra.mxu0 0.0
    %477 = vmatprep.subr.mxu0 0.0
    %478 = vmatpush1.msra.mxu0 0.0
    %479 = vmatprep.subr.mxu0 0.0
    %480 = vmatpush1.msra.mxu0 0.0
    %481 = vmatprep.subr.mxu0 0.0
    %482 = vmatpush1.msra.mxu0 0.0
    %483 = vmatprep.subr.mxu0 0.0
    %484 = vmatpush1.msra.mxu0 0.0
    %485 = vmatprep.subr.mxu0 0.0
    %486 = vmatpush1.msra.mxu0 0.0
    %487 = vmatprep.subr.mxu0 0.0
    %488 = vmatpush1.msra.mxu0 0.0
    %489 = vmatprep.subr.mxu0 0.0
    %490 = vmatpush1.msra.mxu0 0.0
    %491 = vmatprep.subr.mxu0 0.0
    %492 = vmatpush1.msra.mxu0 0.0
    %493 = vmatprep.subr.mxu0 0.0
    %494 = vmatpush1.msra.mxu0 0.0
    %495 = vmatprep.subr.mxu0 0.0
    %496 = vmatpush1.msra.mxu0 0.0
    %497 = vmatprep.subr.mxu0 0.0
    %498 = vmatpush1.msra.mxu0 0.0
    %499 = vmatprep.subr.mxu0 0.0
    %500 = vmatpush1.msra.mxu0 0.0
    %501 = vmatprep.subr.mxu0 0.0
    %502 = vmatpush1.msra.mxu0 0.0
    %503 = vmatprep.subr.mxu0 0.0
    %504 = vmatpush1.msra.mxu0 0.0
    %505 = vmatprep.subr.mxu0 0.0
    %506 = vmatpush1.msra.mxu0 0.0
    %507 = vmatprep.subr.mxu0 0.0
    %508 = vmatpush1.msra.mxu0 0.0
    %509 = vmatprep.subr.mxu0 0.0
    %510 = vmatpush1.msra.mxu0 0.0
    %511 = vmatprep.subr.mxu0 0.0
    %512 = vmatpush1.msra.mxu0 0.0
    %513 = vmatprep.subr.mxu0 0.0
    %514 = vmatpush1.msra.mxu0 0.0
    %515 = vmatprep.subr.mxu0 0.0
    %516 = vmatpush1.msra.mxu0 0.0
    %517 = vmatprep.subr.mxu0 0.0
    %518 = vmatpush1.msra.mxu0 0.0
    %519 = vmatprep.subr.mxu0 0.0
    %520 = vmatpush1.msra.mxu0 0.0
    %521 = vmatprep.subr.mxu0 0.0
    %522 = vmatpush1.msra.mxu0 0.0
    %523 = vmatprep.subr.mxu0 0.0
    %524 = vmatpush1.msra.mxu0 0.0
    %525 = vmatprep.subr.mxu0 0.0
    %526 = vmatpush1.msra.mxu0 0.0
    %527 = vmatprep.subr.mxu0 0.0
    %528 = vmatpush1.msra.mxu0 0.0
    %529 = vmatprep.subr.mxu0 0.0
    %530 = vmatpush1.msra.mxu0 0.0
    %531 = vmatprep.mubr.f32.mxu0 0.0
    %532 = vmatmul.mubr.f32.gmra.mrb[0].mxu0 %v465
    %v533 = vpop.f32.mrb[0].mxu0
    %v534 = vadd.f32 0.0, %v533
    %v535 = vpop.f32.mrb[0].mxu0
    %536 = vdwg.mxu0
    %v538 = vsel %vm130, %v291, 0
    %540 = vmatprep.subr.mxu0 0.0
    %541 = vmatpush1.msra.mxu0 %v294
    %542 = vmatprep.subr.mxu0 0.0
    %543 = vmatpush1.msra.mxu0 %v295
    %544 = vmatprep.subr.mxu0 0.0
    %545 = vmatpush1.msra.mxu0 0.0
    %546 = vmatprep.subr.mxu0 0.0
    %547 = vmatpush1.msra.mxu0 0.0
    %548 = vmatprep.subr.mxu0 0.0
    %549 = vmatpush1.msra.mxu0 0.0
    %550 = vmatprep.subr.mxu0 0.0
    %551 = vmatpush1.msra.mxu0 0.0
    %552 = vmatprep.subr.mxu0 0.0
    %553 = vmatpush1.msra.mxu0 0.0
    %554 = vmatprep.subr.mxu0 0.0
    %555 = vmatpush1.msra.mxu0 0.0
    %556 = vmatprep.subr.mxu0 0.0
    %557 = vmatpush1.msra.mxu0 0.0
    %558 = vmatprep.subr.mxu0 0.0
    %559 = vmatpush1.msra.mxu0 0.0
    %560 = vmatprep.subr.mxu0 0.0
    %561 = vmatpush1.msra.mxu0 0.0
    %562 = vmatprep.subr.mxu0 0.0
    %563 = vmatpush1.msra.mxu0 0.0
    %564 = vmatprep.subr.mxu0 0.0
    %565 = vmatpush1.msra.mxu0 0.0
    %566 = vmatprep.subr.mxu0 0.0
    %567 = vmatpush1.msra.mxu0 0.0
    %568 = vmatprep.subr.mxu0 0.0
    %569 = vmatpush1.msra.mxu0 0.0
    %570 = vmatprep.subr.mxu0 0.0
    %571 = vmatpush1.msra.mxu0 0.0
    %572 = vmatprep.subr.mxu0 0.0
    %573 = vmatpush1.msra.mxu0 0.0
    %574 = vmatprep.subr.mxu0 0.0
    %575 = vmatpush1.msra.mxu0 0.0
    %576 = vmatprep.subr.mxu0 0.0
    %577 = vmatpush1.msra.mxu0 0.0
    %578 = vmatprep.subr.mxu0 0.0
    %579 = vmatpush1.msra.mxu0 0.0
    %580 = vmatprep.subr.mxu0 0.0
    %581 = vmatpush1.msra.mxu0 0.0
    %582 = vmatprep.subr.mxu0 0.0
    %583 = vmatpush1.msra.mxu0 0.0
    %584 = vmatprep.subr.mxu0 0.0
    %585 = vmatpush1.msra.mxu0 0.0
    %586 = vmatprep.subr.mxu0 0.0
    %587 = vmatpush1.msra.mxu0 0.0
    %588 = vmatprep.subr.mxu0 0.0
    %589 = vmatpush1.msra.mxu0 0.0
    %590 = vmatprep.subr.mxu0 0.0
    %591 = vmatpush1.msra.mxu0 0.0
    %592 = vmatprep.subr.mxu0 0.0
    %593 = vmatpush1.msra.mxu0 0.0
    %594 = vmatprep.subr.mxu0 0.0
    %595 = vmatpush1.msra.mxu0 0.0
    %596 = vmatprep.subr.mxu0 0.0
    %597 = vmatpush1.msra.mxu0 0.0
    %598 = vmatprep.subr.mxu0 0.0
    %599 = vmatpush1.msra.mxu0 0.0
    %600 = vmatprep.subr.mxu0 0.0
    %601 = vmatpush1.msra.mxu0 0.0
    %602 = vmatprep.subr.mxu0 0.0
    %603 = vmatpush1.msra.mxu0 0.0
    %604 = vmatprep.mubr.f32.mxu0 0.0
    %605 = vmatmul.mubr.f32.gmra.mrb[0].mxu0 %v538
    %v606 = vpop.f32.mrb[0].mxu0
    %v607 = vadd.f32 %v534, %v606
    %v608 = vpop.f32.mrb[0].mxu0
    %609 = vdwg.mxu0
    %v610 = vadd.f32 %v38, %v607
    %612 = vrot.lane.b32.xlu0 %v124, 96
    %v613 = vpop.permute.xlu0 %612
    %v614 = vsel %vm130, %v124, 0
    %v616 = vsel %vm130, %v613, 0
    %618 = vmatprep.subr.mxu0 0.0
    %619 = vmatpush1.xpose.msra.mxu0 %v616
    %620 = vmatprep.subr.mxu0 0.0
    %621 = vmatpush1.xpose.msra.mxu0 0.0
    %622 = vmatprep.subr.mxu0 0.0
    %623 = vmatpush1.xpose.msra.mxu0 0.0
    %624 = vmatprep.subr.mxu0 0.0
    %625 = vmatpush1.xpose.msra.mxu0 0.0
    %626 = vmatprep.subr.mxu0 0.0
    %627 = vmatpush1.xpose.msra.mxu0 0.0
    %628 = vmatprep.subr.mxu0 0.0
    %629 = vmatpush1.xpose.msra.mxu0 0.0
    %630 = vmatprep.subr.mxu0 0.0
    %631 = vmatpush1.xpose.msra.mxu0 0.0
    %632 = vmatprep.subr.mxu0 0.0
    %633 = vmatpush1.xpose.msra.mxu0 0.0
    %634 = vmatprep.subr.mxu0 0.0
    %635 = vmatpush1.xpose.msra.mxu0 0.0
    %636 = vmatprep.subr.mxu0 0.0
    %637 = vmatpush1.xpose.msra.mxu0 0.0
    %638 = vmatprep.subr.mxu0 0.0
    %639 = vmatpush1.xpose.msra.mxu0 0.0
    %640 = vmatprep.subr.mxu0 0.0
    %641 = vmatpush1.xpose.msra.mxu0 0.0
    %642 = vmatprep.subr.mxu0 0.0
    %643 = vmatpush1.xpose.msra.mxu0 0.0
    %644 = vmatprep.subr.mxu0 0.0
    %645 = vmatpush1.xpose.msra.mxu0 0.0
    %646 = vmatprep.subr.mxu0 0.0
    %647 = vmatpush1.xpose.msra.mxu0 0.0
    %648 = vmatprep.subr.mxu0 0.0
    %649 = vmatpush1.xpose.msra.mxu0 0.0
    %650 = vmatprep.subr.mxu0 0.0
    %651 = vmatpush1.xpose.msra.mxu0 0.0
    %652 = vmatprep.subr.mxu0 0.0
    %653 = vmatpush1.xpose.msra.mxu0 0.0
    %654 = vmatprep.subr.mxu0 0.0
    %655 = vmatpush1.xpose.msra.mxu0 0.0
    %656 = vmatprep.subr.mxu0 0.0
    %657 = vmatpush1.xpose.msra.mxu0 0.0
    %658 = vmatprep.subr.mxu0 0.0
    %659 = vmatpush1.xpose.msra.mxu0 0.0
    %660 = vmatprep.subr.mxu0 0.0
    %661 = vmatpush1.xpose.msra.mxu0 0.0
    %662 = vmatprep.subr.mxu0 0.0
    %663 = vmatpush1.xpose.msra.mxu0 0.0
    %664 = vmatprep.subr.mxu0 0.0
    %665 = vmatpush1.xpose.msra.mxu0 0.0
    %666 = vmatprep.subr.mxu0 0.0
    %667 = vmatpush1.xpose.msra.mxu0 0.0
    %668 = vmatprep.subr.mxu0 0.0
    %669 = vmatpush1.xpose.msra.mxu0 0.0
    %670 = vmatprep.subr.mxu0 0.0
    %671 = vmatpush1.xpose.msra.mxu0 0.0
    %672 = vmatprep.subr.mxu0 0.0
    %673 = vmatpush1.xpose.msra.mxu0 0.0
    %674 = vmatprep.subr.mxu0 0.0
    %675 = vmatpush1.xpose.msra.mxu0 0.0
    %676 = vmatprep.subr.mxu0 0.0
    %677 = vmatpush1.xpose.msra.mxu0 0.0
    %678 = vmatprep.subr.mxu0 0.0
    %679 = vmatpush1.xpose.msra.mxu0 0.0
    %680 = vmatprep.subr.mxu0 0.0
    %681 = vmatpush1.xpose.msra.mxu0 0.0
    %682 = vmatprep.mubr.f32.mxu0 0.0
    %683 = vmatmul.mubr.f32.gmra.mrb[0].mxu0 %v614
    %v684 = vpop.f32.mrb[0].mxu0
    %v685 = vadd.f32 0.0, %v684
    %v686 = vpop.f32.mrb[0].mxu0
    %687 = vdwg.mxu0
    %v688 = vmul.f32 %v685, 8.0
    %v689 = vsel %vm206, %v688, -inf
    %690 = vmax.xlane.f32.xlu0 %v689
    %v691 = vpop.xlane.xlu0 %690
    %v692 = vsub.f32 %v688, %v691
    %v693 = vmul.f32 %v692, 1.442695
    %v694 = vpow.pop %v693
    %v695 = vsel %vm206, %v694, 0.0
    %696 = vadd.xlane.f32.xlu0 %v695
    %v697 = vpop.xlane.xlu0 %696
    %v698 = vrcp.pop %v697
    %v699 = vmul.f32 %v694, %v698
    %700 = vrot.lane.b32.xlu0 %v124, 64
    %v701 = vpop.permute.xlu0 %700
    %v704 = vsel %vm206, %v699, 0
    %706 = vmatprep.subr.mxu0 0.0
    %707 = vmatpush1.msra.mxu0 %v701
    %708 = vmatprep.subr.mxu0 0.0
    %709 = vmatpush1.msra.mxu0 0.0
    %710 = vmatprep.subr.mxu0 0.0
    %711 = vmatpush1.msra.mxu0 0.0
    %712 = vmatprep.subr.mxu0 0.0
    %713 = vmatpush1.msra.mxu0 0.0
    %714 = vmatprep.subr.mxu0 0.0
    %715 = vmatpush1.msra.mxu0 0.0
    %716 = vmatprep.subr.mxu0 0.0
    %717 = vmatpush1.msra.mxu0 0.0
    %718 = vmatprep.subr.mxu0 0.0
    %719 = vmatpush1.msra.mxu0 0.0
    %720 = vmatprep.subr.mxu0 0.0
    %721 = vmatpush1.msra.mxu0 0.0
    %722 = vmatprep.subr.mxu0 0.0
    %723 = vmatpush1.msra.mxu0 0.0
    %724 = vmatprep.subr.mxu0 0.0
    %725 = vmatpush1.msra.mxu0 0.0
    %726 = vmatprep.subr.mxu0 0.0
    %727 = vmatpush1.msra.mxu0 0.0
    %728 = vmatprep.subr.mxu0 0.0
    %729 = vmatpush1.msra.mxu0 0.0
    %730 = vmatprep.subr.mxu0 0.0
    %731 = vmatpush1.msra.mxu0 0.0
    %732 = vmatprep.subr.mxu0 0.0
    %733 = vmatpush1.msra.mxu0 0.0
    %734 = vmatprep.subr.mxu0 0.0
    %735 = vmatpush1.msra.mxu0 0.0
    %736 = vmatprep.subr.mxu0 0.0
    %737 = vmatpush1.msra.mxu0 0.0
    %738 = vmatprep.subr.mxu0 0.0
    %739 = vmatpush1.msra.mxu0 0.0
    %740 = vmatprep.subr.mxu0 0.0
    %741 = vmatpush1.msra.mxu0 0.0
    %742 = vmatprep.subr.mxu0 0.0
    %743 = vmatpush1.msra.mxu0 0.0
    %744 = vmatprep.subr.mxu0 0.0
    %745 = vmatpush1.msra.mxu0 0.0
    %746 = vmatprep.subr.mxu0 0.0
    %747 = vmatpush1.msra.mxu0 0.0
    %748 = vmatprep.subr.mxu0 0.0
    %749 = vmatpush1.msra.mxu0 0.0
    %750 = vmatprep.subr.mxu0 0.0
    %751 = vmatpush1.msra.mxu0 0.0
    %752 = vmatprep.subr.mxu0 0.0
    %753 = vmatpush1.msra.mxu0 0.0
    %754 = vmatprep.subr.mxu0 0.0
    %755 = vmatpush1.msra.mxu0 0.0
    %756 = vmatprep.subr.mxu0 0.0
    %757 = vmatpush1.msra.mxu0 0.0
    %758 = vmatprep.subr.mxu0 0.0
    %759 = vmatpush1.msra.mxu0 0.0
    %760 = vmatprep.subr.mxu0 0.0
    %761 = vmatpush1.msra.mxu0 0.0
    %762 = vmatprep.subr.mxu0 0.0
    %763 = vmatpush1.msra.mxu0 0.0
    %764 = vmatprep.subr.mxu0 0.0
    %765 = vmatpush1.msra.mxu0 0.0
    %766 = vmatprep.subr.mxu0 0.0
    %767 = vmatpush1.msra.mxu0 0.0
    %768 = vmatprep.subr.mxu0 0.0
    %769 = vmatpush1.msra.mxu0 0.0
    %770 = vmatprep.mubr.f32.mxu0 0.0
    %771 = vmatmul.mubr.f32.gmra.mrb[0].mxu0 %v704
    %v772 = vpop.f32.mrb[0].mxu0
    %v773 = vadd.f32 0.0, %v772
    %v774 = vpop.f32.mrb[0].mxu0
    %775 = vdwg.mxu0
    %776 = vrot.lane.b32.xlu0 %v124, 112
    %v777 = vpop.permute.xlu0 %776
    %778 = vrot.lane.b32.xlu0 %v124, 80
    %v779 = vpop.permute.xlu0 %778
    %v780 = vsel %vm130, %v777, 0
    %v782 = vsel %vm130, %v779, 0
    %784 = vmatprep.subr.mxu0 0.0
    %785 = vmatpush1.xpose.msra.mxu0 %v782
    %786 = vmatprep.subr.mxu0 0.0
    %787 = vmatpush1.xpose.msra.mxu0 0.0
    %788 = vmatprep.subr.mxu0 0.0
    %789 = vmatpush1.xpose.msra.mxu0 0.0
    %790 = vmatprep.subr.mxu0 0.0
    %791 = vmatpush1.xpose.msra.mxu0 0.0
    %792 = vmatprep.subr.mxu0 0.0
    %793 = vmatpush1.xpose.msra.mxu0 0.0
    %794 = vmatprep.subr.mxu0 0.0
    %795 = vmatpush1.xpose.msra.mxu0 0.0
    %796 = vmatprep.subr.mxu0 0.0
    %797 = vmatpush1.xpose.msra.mxu0 0.0
    %798 = vmatprep.subr.mxu0 0.0
    %799 = vmatpush1.xpose.msra.mxu0 0.0
    %800 = vmatprep.subr.mxu0 0.0
    %801 = vmatpush1.xpose.msra.mxu0 0.0
    %802 = vmatprep.subr.mxu0 0.0
    %803 = vmatpush1.xpose.msra.mxu0 0.0
    %804 = vmatprep.subr.mxu0 0.0
    %805 = vmatpush1.xpose.msra.mxu0 0.0
    %806 = vmatprep.subr.mxu0 0.0
    %807 = vmatpush1.xpose.msra.mxu0 0.0
    %808 = vmatprep.subr.mxu0 0.0
    %809 = vmatpush1.xpose.msra.mxu0 0.0
    %810 = vmatprep.subr.mxu0 0.0
    %811 = vmatpush1.xpose.msra.mxu0 0.0
    %812 = vmatprep.subr.mxu0 0.0
    %813 = vmatpush1.xpose.msra.mxu0 0.0
    %814 = vmatprep.subr.mxu0 0.0
    %815 = vmatpush1.xpose.msra.mxu0 0.0
    %816 = vmatprep.subr.mxu0 0.0
    %817 = vmatpush1.xpose.msra.mxu0 0.0
    %818 = vmatprep.subr.mxu0 0.0
    %819 = vmatpush1.xpose.msra.mxu0 0.0
    %820 = vmatprep.subr.mxu0 0.0
    %821 = vmatpush1.xpose.msra.mxu0 0.0
    %822 = vmatprep.subr.mxu0 0.0
    %823 = vmatpush1.xpose.msra.mxu0 0.0
    %824 = vmatprep.subr.mxu0 0.0
    %825 = vmatpush1.xpose.msra.mxu0 0.0
    %826 = vmatprep.subr.mxu0 0.0
    %827 = vmatpush1.xpose.msra.mxu0 0.0
    %828 = vmatprep.subr.mxu0 0.0
    %829 = vmatpush1.xpose.msra.mxu0 0.0
    %830 = vmatprep.subr.mxu0 0.0
    %831 = vmatpush1.xpose.msra.mxu0 0.0
    %832 = vmatprep.subr.mxu0 0.0
    %833 = vmatpush1.xpose.msra.mxu0 0.0
    %834 = vmatprep.subr.mxu0 0.0
    %835 = vmatpush1.xpose.msra.mxu0 0.0
    %836 = vmatprep.subr.mxu0 0.0
    %837 = vmatpush1.xpose.msra.mxu0 0.0
    %838 = vmatprep.subr.mxu0 0.0
    %839 = vmatpush1.xpose.msra.mxu0 0.0
    %840 = vmatprep.subr.mxu0 0.0
    %841 = vmatpush1.xpose.msra.mxu0 0.0
    %842 = vmatprep.subr.mxu0 0.0
    %843 = vmatpush1.xpose.msra.mxu0 0.0
    %844 = vmatprep.subr.mxu0 0.0
    %845 = vmatpush1.xpose.msra.mxu0 0.0
    %846 = vmatprep.subr.mxu0 0.0
    %847 = vmatpush1.xpose.msra.mxu0 0.0
    %848 = vmatprep.mubr.f32.mxu0 0.0
    %849 = vmatmul.mubr.f32.gmra.mrb[0].mxu0 %v780
    %v850 = vpop.f32.mrb[0].mxu0
    %v851 = vadd.f32 0.0, %v850
    %v852 = vpop.f32.mrb[0].mxu0
    %853 = vdwg.mxu0
    %v854 = vmul.f32 %v851, 8.0
    %v855 = vsel %vm206, %v854, -inf
    %856 = vmax.xlane.f32.xlu0 %v855
    %v857 = vpop.xlane.xlu0 %856
    %v858 = vsub.f32 %v854, %v857
    %v859 = vmul.f32 %v858, 1.442695
    %v860 = vpow.pop %v859
    %v861 = vsel %vm206, %v860, 0.0
    %862 = vadd.xlane.f32.xlu0 %v861
    %v863 = vpop.xlane.xlu0 %862
    %v864 = vrcp.pop %v863
    %v865 = vmul.f32 %v860, %v864
    %866 = vrot.lane.b32.xlu0 %v124, 48
    %v867 = vpop.permute.xlu0 %866
    %v870 = vsel %vm206, %v865, 0
    %872 = vmatprep.subr.mxu0 0.0
    %873 = vmatpush1.msra.mxu0 %v867
    %874 = vmatprep.subr.mxu0 0.0
    %875 = vmatpush1.msra.mxu0 0.0
    %876 = vmatprep.subr.mxu0 0.0
    %877 = vmatpush1.msra.mxu0 0.0
    %878 = vmatprep.subr.mxu0 0.0
    %879 = vmatpush1.msra.mxu0 0.0
    %880 = vmatprep.subr.mxu0 0.0
    %881 = vmatpush1.msra.mxu0 0.0
    %882 = vmatprep.subr.mxu0 0.0
    %883 = vmatpush1.msra.mxu0 0.0
    %884 = vmatprep.subr.mxu0 0.0
    %885 = vmatpush1.msra.mxu0 0.0
    %886 = vmatprep.subr.mxu0 0.0
    %887 = vmatpush1.msra.mxu0 0.0
    %888 = vmatprep.subr.mxu0 0.0
    %889 = vmatpush1.msra.mxu0 0.0
    %890 = vmatprep.subr.mxu0 0.0
    %891 = vmatpush1.msra.mxu0 0.0
    %892 = vmatprep.subr.mxu0 0.0
    %893 = vmatpush1.msra.mxu0 0.0
    %894 = vmatprep.subr.mxu0 0.0
    %895 = vmatpush1.msra.mxu0 0.0
    %896 = vmatprep.subr.mxu0 0.0
    %897 = vmatpush1.msra.mxu0 0.0
    %898 = vmatprep.subr.mxu0 0.0
    %899 = vmatpush1.msra.mxu0 0.0
    %900 = vmatprep.subr.mxu0 0.0
    %901 = vmatpush1.msra.mxu0 0.0
    %902 = vmatprep.subr.mxu0 0.0
    %903 = vmatpush1.msra.mxu0 0.0
    %904 = vmatprep.subr.mxu0 0.0
    %905 = vmatpush1.msra.mxu0 0.0
    %906 = vmatprep.subr.mxu0 0.0
    %907 = vmatpush1.msra.mxu0 0.0
    %908 = vmatprep.subr.mxu0 0.0
    %909 = vmatpush1.msra.mxu0 0.0
    %910 = vmatprep.subr.mxu0 0.0
    %911 = vmatpush1.msra.mxu0 0.0
    %912 = vmatprep.subr.mxu0 0.0
    %913 = vmatpush1.msra.mxu0 0.0
    %914 = vmatprep.subr.mxu0 0.0
    %915 = vmatpush1.msra.mxu0 0.0
    %916 = vmatprep.subr.mxu0 0.0
    %917 = vmatpush1.msra.mxu0 0.0
    %918 = vmatprep.subr.mxu0 0.0
    %919 = vmatpush1.msra.mxu0 0.0
    %920 = vmatprep.subr.mxu0 0.0
    %921 = vmatpush1.msra.mxu0 0.0
    %922 = vmatprep.subr.mxu0 0.0
    %923 = vmatpush1.msra.mxu0 0.0
    %924 = vmatprep.subr.mxu0 0.0
    %925 = vmatpush1.msra.mxu0 0.0
    %926 = vmatprep.subr.mxu0 0.0
    %927 = vmatpush1.msra.mxu0 0.0
    %928 = vmatprep.subr.mxu0 0.0
    %929 = vmatpush1.msra.mxu0 0.0
    %930 = vmatprep.subr.mxu0 0.0
    %931 = vmatpush1.msra.mxu0 0.0
    %932 = vmatprep.subr.mxu0 0.0
    %933 = vmatpush1.msra.mxu0 0.0
    %934 = vmatprep.subr.mxu0 0.0
    %935 = vmatpush1.msra.mxu0 0.0
    %936 = vmatprep.mubr.f32.mxu0 0.0
    %937 = vmatmul.mubr.f32.gmra.mrb[0].mxu0 %v870
    %v938 = vpop.f32.mrb[0].mxu0
    %v939 = vadd.f32 0.0, %v938
    %v940 = vpop.f32.mrb[0].mxu0
    %941 = vdwg.mxu0
    %v943 = vsel %vm130, %v939, 0
    %945 = vmatprep.subr.mxu0 0.0
    %946 = vmatpush1.msra.mxu0 %v462
    %947 = vmatprep.subr.mxu0 0.0
    %948 = vmatpush1.msra.mxu0 %v463
    %949 = vmatprep.subr.mxu0 0.0
    %950 = vmatpush1.msra.mxu0 0.0
    %951 = vmatprep.subr.mxu0 0.0
    %952 = vmatpush1.msra.mxu0 0.0
    %953 = vmatprep.subr.mxu0 0.0
    %954 = vmatpush1.msra.mxu0 0.0
    %955 = vmatprep.subr.mxu0 0.0
    %956 = vmatpush1.msra.mxu0 0.0
    %957 = vmatprep.subr.mxu0 0.0
    %958 = vmatpush1.msra.mxu0 0.0
    %959 = vmatprep.subr.mxu0 0.0
    %960 = vmatpush1.msra.mxu0 0.0
    %961 = vmatprep.subr.mxu0 0.0
    %962 = vmatpush1.msra.mxu0 0.0
    %963 = vmatprep.subr.mxu0 0.0
    %964 = vmatpush1.msra.mxu0 0.0
    %965 = vmatprep.subr.mxu0 0.0
    %966 = vmatpush1.msra.mxu0 0.0
    %967 = vmatprep.subr.mxu0 0.0
    %968 = vmatpush1.msra.mxu0 0.0
    %969 = vmatprep.subr.mxu0 0.0
    %970 = vmatpush1.msra.mxu0 0.0
    %971 = vmatprep.subr.mxu0 0.0
    %972 = vmatpush1.msra.mxu0 0.0
    %973 = vmatprep.subr.mxu0 0.0
    %974 = vmatpush1.msra.mxu0 0.0
    %975 = vmatprep.subr.mxu0 0.0
    %976 = vmatpush1.msra.mxu0 0.0
    %977 = vmatprep.subr.mxu0 0.0
    %978 = vmatpush1.msra.mxu0 0.0
    %979 = vmatprep.subr.mxu0 0.0
    %980 = vmatpush1.msra.mxu0 0.0
    %981 = vmatprep.subr.mxu0 0.0
    %982 = vmatpush1.msra.mxu0 0.0
    %983 = vmatprep.subr.mxu0 0.0
    %984 = vmatpush1.msra.mxu0 0.0
    %985 = vmatprep.subr.mxu0 0.0
    %986 = vmatpush1.msra.mxu0 0.0
    %987 = vmatprep.subr.mxu0 0.0
    %988 = vmatpush1.msra.mxu0 0.0
    %989 = vmatprep.subr.mxu0 0.0
    %990 = vmatpush1.msra.mxu0 0.0
    %991 = vmatprep.subr.mxu0 0.0
    %992 = vmatpush1.msra.mxu0 0.0
    %993 = vmatprep.subr.mxu0 0.0
    %994 = vmatpush1.msra.mxu0 0.0
    %995 = vmatprep.subr.mxu0 0.0
    %996 = vmatpush1.msra.mxu0 0.0
    %997 = vmatprep.subr.mxu0 0.0
    %998 = vmatpush1.msra.mxu0 0.0
    %999 = vmatprep.subr.mxu0 0.0
    %1000 = vmatpush1.msra.mxu0 0.0
    %1001 = vmatprep.subr.mxu0 0.0
    %1002 = vmatpush1.msra.mxu0 0.0
    %1003 = vmatprep.subr.mxu0 0.0
    %1004 = vmatpush1.msra.mxu0 0.0
    %1005 = vmatprep.subr.mxu0 0.0
    %1006 = vmatpush1.msra.mxu0 0.0
    %1007 = vmatprep.subr.mxu0 0.0
    %1008 = vmatpush1.msra.mxu0 0.0
    %1009 = vmatprep.mubr.f32.mxu0 0.0
    %1010 = vmatmul.mubr.f32.gmra.mrb[0].mxu0 %v943
    %v1011 = vpop.f32.mrb[0].mxu0
    %v1012 = vadd.f32 0.0, %v1011
    %v1013 = vpop.f32.mrb[0].mxu0
    %1014 = vdwg.mxu0
    %v1016 = vsel %vm130, %v773, 0
    %1018 = vmatprep.subr.mxu0 0.0
    %1019 = vmatpush1.msra.mxu0 %v294
    %1020 = vmatprep.subr.mxu0 0.0
    %1021 = vmatpush1.msra.mxu0 %v295
    %1022 = vmatprep.subr.mxu0 0.0
    %1023 = vmatpush1.msra.mxu0 0.0
    %1024 = vmatprep.subr.mxu0 0.0
    %1025 = vmatpush1.msra.mxu0 0.0
    %1026 = vmatprep.subr.mxu0 0.0
    %1027 = vmatpush1.msra.mxu0 0.0
    %1028 = vmatprep.subr.mxu0 0.0
    %1029 = vmatpush1.msra.mxu0 0.0
    %1030 = vmatprep.subr.mxu0 0.0
    %1031 = vmatpush1.msra.mxu0 0.0
    %1032 = vmatprep.subr.mxu0 0.0
    %1033 = vmatpush1.msra.mxu0 0.0
    %1034 = vmatprep.subr.mxu0 0.0
    %1035 = vmatpush1.msra.mxu0 0.0
    %1036 = vmatprep.subr.mxu0 0.0
    %1037 = vmatpush1.msra.mxu0 0.0
    %1038 = vmatprep.subr.mxu0 0.0
    %1039 = vmatpush1.msra.mxu0 0.0
    %1040 = vmatprep.subr.mxu0 0.0
    %1041 = vmatpush1.msra.mxu0 0.0
    %1042 = vmatprep.subr.mxu0 0.0
    %1043 = vmatpush1.msra.mxu0 0.0
    %1044 = vmatprep.subr.mxu0 0.0
    %1045 = vmatpush1.msra.mxu0 0.0
    %1046 = vmatprep.subr.mxu0 0.0
    %1047 = vmatpush1.msra.mxu0 0.0
    %1048 = vmatprep.subr.mxu0 0.0
    %1049 = vmatpush1.msra.mxu0 0.0
    %1050 = vmatprep.subr.mxu0 0.0
    %1051 = vmatpush1.msra.mxu0 0.0
    %1052 = vmatprep.subr.mxu0 0.0
    %1053 = vmatpush1.msra.mxu0 0.0
    %1054 = vmatprep.subr.mxu0 0.0
    %1055 = vmatpush1.msra.mxu0 0.0
    %1056 = vmatprep.subr.mxu0 0.0
    %1057 = vmatpush1.msra.mxu0 0.0
    %1058 = vmatprep.subr.mxu0 0.0
    %1059 = vmatpush1.msra.mxu0 0.0
    %1060 = vmatprep.subr.mxu0 0.0
    %1061 = vmatpush1.msra.mxu0 0.0
    %1062 = vmatprep.subr.mxu0 0.0
    %1063 = vmatpush1.msra.mxu0 0.0
    %1064 = vmatprep.subr.mxu0 0.0
    %1065 = vmatpush1.msra.mxu0 0.0
    %1066 = vmatprep.subr.mxu0 0.0
    %1067 = vmatpush1.msra.mxu0 0.0
    %1068 = vmatprep.subr.mxu0 0.0
    %1069 = vmatpush1.msra.mxu0 0.0
    %1070 = vmatprep.subr.mxu0 0.0
    %1071 = vmatpush1.msra.mxu0 0.0
    %1072 = vmatprep.subr.mxu0 0.0
    %1073 = vmatpush1.msra.mxu0 0.0
    %1074 = vmatprep.subr.mxu0 0.0
    %1075 = vmatpush1.msra.mxu0 0.0
    %1076 = vmatprep.subr.mxu0 0.0
    %1077 = vmatpush1.msra.mxu0 0.0
    %1078 = vmatprep.subr.mxu0 0.0
    %1079 = vmatpush1.msra.mxu0 0.0
    %1080 = vmatprep.subr.mxu0 0.0
    %1081 = vmatpush1.msra.mxu0 0.0
    %1082 = vmatprep.mubr.f32.mxu0 0.0
    %1083 = vmatmul.mubr.f32.gmra.mrb[0].mxu0 %v1016
    %v1084 = vpop.f32.mrb[0].mxu0
    %v1085 = vadd.f32 %v1012, %v1084
    %v1086 = vpop.f32.mrb[0].mxu0
    %1087 = vdwg.mxu0
    %v1088 = vadd.f32 %v39, %v1085
    %v1089 = vsel %vm45, %v610, 0.0
    %1090 = vadd.xlane.f32.xlu0 %v1089
    %v1091 = vpop.xlane.xlu0 %1090
    %v1092 = vsel %vm45, %v1088, 0.0
    %1093 = vadd.xlane.f32.xlu0 %v1092
    %v1094 = vpop.xlane.xlu0 %1093
    %v1095 = vrcp.pop 32.0
    %v1096 = vmul.f32 %v1091, %v1095
    %v1097 = vmul.f32 %v1094, %v1095
    %v1098 = vsub.f32 %v610, %v1096
    %v1099 = vsub.f32 %v1088, %v1097
    %v1100 = vmul.f32 %v1098, %v1098
    %v1101 = vmul.f32 %v1099, %v1099
    %v1102 = vsel %vm45, %v1100, 0.0
    %1103 = vadd.xlane.f32.xlu0 %v1102
    %v1104 = vpop.xlane.xlu0 %1103
    %v1105 = vsel %vm45, %v1101, 0.0
    %1106 = vadd.xlane.f32.xlu0 %v1105
    %v1107 = vpop.xlane.xlu0 %1106
    %v1108 = vmul.f32 %v1104, %v1095
    %v1109 = vmul.f32 %v1107, %v1095
    %v1110 = vadd.f32 %v1108, 1e-05
    %v1111 = vadd.f32 %v1109, 1e-05
    %v1112 = vrsqrt.pop %v1110
    %v1113 = vrsqrt.pop %v1111
    %v1114 = vmul.f32 %v1098, %v1112
    %v1115 = vmul.f32 %v1099, %v1113
    %v1116 = vlaneseq
    %v1117 = vshrl.u32 %v1116, 7
    %v1118 = vsub.s32 0, %v1117
    %v1119 = vrot.slane %v40, %v1118
    %v1120 = vmul.f32 %v1114, %v1119
    %v1121 = vmul.f32 %v1115, %v1119
    %v1122 = vlaneseq
    %v1123 = vshrl.u32 %v1122, 7
    %v1124 = vsub.s32 1, %v1123
    %v1125 = vrot.slane %v40, %v1124
    %v1126 = vadd.f32 %v1120, %v1125
    %v1127 = vadd.f32 %v1121, %v1125
    %v1128 = vld [vmem:[%s3] sm:$0xff]
    %v1129 = vld [vmem:[%s3 + $0x8] sm:$0xff]
    %v1130 = vld [vmem:[%s3 + $0x10] sm:$0xff]
    %v1131 = vld [vmem:[%s3 + $0x18] sm:$0xff]
    %v1132 = vlaneseq
    %v1133 = vshrl.u32 %v1132, 7
    %v1134 = vsub.s32 2, %v1133
    %v1135 = vrot.slane %v40, %v1134
    %v1137 = vsel %vm45, %v1126, 0
    %v1140 = vsel %vm45, %v1127, 0
    %1142 = vmatprep.subr.mxu0 0.0
    %1143 = vmatpush1.msra.mxu0 %v1128
    %1144 = vmatprep.subr.mxu0 0.0
    %1145 = vmatpush1.msra.mxu0 %v1129
    %1146 = vmatprep.subr.mxu0 0.0
    %1147 = vmatpush1.msra.mxu0 %v1130
    %1148 = vmatprep.subr.mxu0 0.0
    %1149 = vmatpush1.msra.mxu0 %v1131
    %1150 = vmatprep.subr.mxu0 0.0
    %1151 = vmatpush1.msra.mxu0 0.0
    %1152 = vmatprep.subr.mxu0 0.0
    %1153 = vmatpush1.msra.mxu0 0.0
    %1154 = vmatprep.subr.mxu0 0.0
    %1155 = vmatpush1.msra.mxu0 0.0
    %1156 = vmatprep.subr.mxu0 0.0
    %1157 = vmatpush1.msra.mxu0 0.0
    %1158 = vmatprep.subr.mxu0 0.0
    %1159 = vmatpush1.msra.mxu0 0.0
    %1160 = vmatprep.subr.mxu0 0.0
    %1161 = vmatpush1.msra.mxu0 0.0
    %1162 = vmatprep.subr.mxu0 0.0
    %1163 = vmatpush1.msra.mxu0 0.0
    %1164 = vmatprep.subr.mxu0 0.0
    %1165 = vmatpush1.msra.mxu0 0.0
    %1166 = vmatprep.subr.mxu0 0.0
    %1167 = vmatpush1.msra.mxu0 0.0
    %1168 = vmatprep.subr.mxu0 0.0
    %1169 = vmatpush1.msra.mxu0 0.0
    %1170 = vmatprep.subr.mxu0 0.0
    %1171 = vmatpush1.msra.mxu0 0.0
    %1172 = vmatprep.subr.mxu0 0.0
    %1173 = vmatpush1.msra.mxu0 0.0
    %1174 = vmatprep.subr.mxu0 0.0
    %1175 = vmatpush1.msra.mxu0 0.0
    %1176 = vmatprep.subr.mxu0 0.0
    %1177 = vmatpush1.msra.mxu0 0.0
    %1178 = vmatprep.subr.mxu0 0.0
    %1179 = vmatpush1.msra.mxu0 0.0
    %1180 = vmatprep.subr.mxu0 0.0
    %1181 = vmatpush1.msra.mxu0 0.0
    %1182 = vmatprep.subr.mxu0 0.0
    %1183 = vmatpush1.msra.mxu0 0.0
    %1184 = vmatprep.subr.mxu0 0.0
    %1185 = vmatpush1.msra.mxu0 0.0
    %1186 = vmatprep.subr.mxu0 0.0
    %1187 = vmatpush1.msra.mxu0 0.0
    %1188 = vmatprep.subr.mxu0 0.0
    %1189 = vmatpush1.msra.mxu0 0.0
    %1190 = vmatprep.subr.mxu0 0.0
    %1191 = vmatpush1.msra.mxu0 0.0
    %1192 = vmatprep.subr.mxu0 0.0
    %1193 = vmatpush1.msra.mxu0 0.0
    %1194 = vmatprep.subr.mxu0 0.0
    %1195 = vmatpush1.msra.mxu0 0.0
    %1196 = vmatprep.subr.mxu0 0.0
    %1197 = vmatpush1.msra.mxu0 0.0
    %1198 = vmatprep.subr.mxu0 0.0
    %1199 = vmatpush1.msra.mxu0 0.0
    %1200 = vmatprep.subr.mxu0 0.0
    %1201 = vmatpush1.msra.mxu0 0.0
    %1202 = vmatprep.subr.mxu0 0.0
    %1203 = vmatpush1.msra.mxu0 0.0
    %1204 = vmatprep.subr.mxu0 0.0
    %1205 = vmatpush1.msra.mxu0 0.0
    %1206 = vmatprep.mubr.f32.mxu0 0.0
    %1207 = vmatmul.mubr.f32.gmra.mrb[0].mxu0 %v1137
    %v1208 = vpop.f32.mrb[0].mxu0
    %v1209 = vadd.f32 %v1135, %v1208
    %v1210 = vpop.f32.mrb[0].mxu0
    %1211 = vmatprep.mubr.f32.mxu0 0.0
    %1212 = vmatmul.mubr.f32.gmra.mrb[0].mxu0 %v1140
    %v1213 = vpop.f32.mrb[0].mxu0
    %v1214 = vadd.f32 %v1135, %v1213
    %v1215 = vpop.f32.mrb[0].mxu0
    %1216 = vdwg.mxu0
    %v1217 = vmul.f32 %v1209, 0.5
    %v1218 = vmul.f32 %v1214, 0.5
    %v1219 = vmul.f32 %v1209, 0.70710677
    %v1220 = vmul.f32 %v1214, 0.70710677
    %v1221 = verf.f32.pop %v1219
    %v1222 = verf.f32.pop %v1220
    %v1223 = vadd.f32 %v1221, 1.0
    %v1224 = vadd.f32 %v1222, 1.0
    %v1225 = vmul.f32 %v1217, %v1223
    %v1226 = vmul.f32 %v1218, %v1224
    %v1227 = vld [vmem:[%s4] sm:$0xff]
    %v1228 = vld [vmem:[%s4 + $0x8] sm:$0xff]
    %v1229 = vld [vmem:[%s4 + $0x10] sm:$0xff]
    %v1230 = vld [vmem:[%s4 + $0x18] sm:$0xff]
    %v1231 = vld [vmem:[%s4 + $0x20] sm:$0xff]
    %v1232 = vld [vmem:[%s4 + $0x28] sm:$0xff]
    %v1233 = vld [vmem:[%s4 + $0x30] sm:$0xff]
    %v1234 = vld [vmem:[%s4 + $0x38] sm:$0xff]
    %v1235 = vlaneseq
    %v1236 = vshrl.u32 %v1235, 7
    %v1237 = vsub.s32 3, %v1236
    %v1238 = vrot.slane %v40, %v1237
    %vm1239 = vcmask 523264
    %v1241 = vsel %vm1239, %v1225, 0
    %v1244 = vsel %vm1239, %v1226, 0
    %1246 = vmatprep.subr.mxu0 0.0
    %1247 = vmatpush1.msra.mxu0 %v1227
    %1248 = vmatprep.subr.mxu0 0.0
    %1249 = vmatpush1.msra.mxu0 %v1228
    %1250 = vmatprep.subr.mxu0 0.0
    %1251 = vmatpush1.msra.mxu0 %v1229
    %1252 = vmatprep.subr.mxu0 0.0
    %1253 = vmatpush1.msra.mxu0 %v1230
    %1254 = vmatprep.subr.mxu0 0.0
    %1255 = vmatpush1.msra.mxu0 %v1231
    %1256 = vmatprep.subr.mxu0 0.0
    %1257 = vmatpush1.msra.mxu0 %v1232
    %1258 = vmatprep.subr.mxu0 0.0
    %1259 = vmatpush1.msra.mxu0 %v1233
    %1260 = vmatprep.subr.mxu0 0.0
    %1261 = vmatpush1.msra.mxu0 %v1234
    %1262 = vmatprep.subr.mxu0 0.0
    %1263 = vmatpush1.msra.mxu0 0.0
    %1264 = vmatprep.subr.mxu0 0.0
    %1265 = vmatpush1.msra.mxu0 0.0
    %1266 = vmatprep.subr.mxu0 0.0
    %1267 = vmatpush1.msra.mxu0 0.0
    %1268 = vmatprep.subr.mxu0 0.0
    %1269 = vmatpush1.msra.mxu0 0.0
    %1270 = vmatprep.subr.mxu0 0.0
    %1271 = vmatpush1.msra.mxu0 0.0
    %1272 = vmatprep.subr.mxu0 0.0
    %1273 = vmatpush1.msra.mxu0 0.0
    %1274 = vmatprep.subr.mxu0 0.0
    %1275 = vmatpush1.msra.mxu0 0.0
    %1276 = vmatprep.subr.mxu0 0.0
    %1277 = vmatpush1.msra.mxu0 0.0
    %1278 = vmatprep.subr.mxu0 0.0
    %1279 = vmatpush1.msra.mxu0 0.0
    %1280 = vmatprep.subr.mxu0 0.0
    %1281 = vmatpush1.msra.mxu0 0.0
    %1282 = vmatprep.subr.mxu0 0.0
    %1283 = vmatpush1.msra.mxu0 0.0
    %1284 = vmatprep.subr.mxu0 0.0
    %1285 = vmatpush1.msra.mxu0 0.0
    %1286 = vmatprep.subr.mxu0 0.0
    %1287 = vmatpush1.msra.mxu0 0.0
    %1288 = vmatprep.subr.mxu0 0.0
    %1289 = vmatpush1.msra.mxu0 0.0
    %1290 = vmatprep.subr.mxu0 0.0
    %1291 = vmatpush1.msra.mxu0 0.0
    %1292 = vmatprep.subr.mxu0 0.0
    %1293 = vmatpush1.msra.mxu0 0.0
    %1294 = vmatprep.subr.mxu0 0.0
    %1295 = vmatpush1.msra.mxu0 0.0
    %1296 = vmatprep.subr.mxu0 0.0
    %1297 = vmatpush1.msra.mxu0 0.0
    %1298 = vmatprep.subr.mxu0 0.0
    %1299 = vmatpush1.msra.mxu0 0.0
    %1300 = vmatprep.subr.mxu0 0.0
    %1301 = vmatpush1.msra.mxu0 0.0
    %1302 = vmatprep.subr.mxu0 0.0
    %1303 = vmatpush1.msra.mxu0 0.0
    %1304 = vmatprep.subr.mxu0 0.0
    %1305 = vmatpush1.msra.mxu0 0.0
    %1306 = vmatprep.subr.mxu0 0.0
    %1307 = vmatpush1.msra.mxu0 0.0
    %1308 = vmatprep.subr.mxu0 0.0
    %1309 = vmatpush1.msra.mxu0 0.0
    %1310 = vmatprep.mubr.f32.mxu0 0.0
    %1311 = vmatmul.mubr.f32.gmra.mrb[0].mxu0 %v1241
    %v1312 = vpop.f32.mrb[0].mxu0
    %v1313 = vadd.f32 %v1238, %v1312
    %v1314 = vpop.f32.mrb[0].mxu0
    %1315 = vmatprep.mubr.f32.mxu0 0.0
    %1316 = vmatmul.mubr.f32.gmra.mrb[0].mxu0 %v1244
    %v1317 = vpop.f32.mrb[0].mxu0
    %v1318 = vadd.f32 %v1238, %v1317
    %v1319 = vpop.f32.mrb[0].mxu0
    %1320 = vdwg.mxu0
    %v1321 = vadd.f32 %v1126, %v1313
    %v1322 = vadd.f32 %v1127, %v1318
    %v1323 = vsel %vm45, %v1321, 0.0
    %1324 = vadd.xlane.f32.xlu0 %v1323
    %v1325 = vpop.xlane.xlu0 %1324
    %v1326 = vsel %vm45, %v1322, 0.0
    %1327 = vadd.xlane.f32.xlu0 %v1326
    %v1328 = vpop.xlane.xlu0 %1327
    %v1329 = vmul.f32 %v1325, %v1095
    %v1330 = vmul.f32 %v1328, %v1095
    %v1331 = vsub.f32 %v1321, %v1329
    %v1332 = vsub.f32 %v1322, %v1330
    %v1333 = vmul.f32 %v1331, %v1331
    %v1334 = vmul.f32 %v1332, %v1332
    %v1335 = vsel %vm45, %v1333, 0.0
    %1336 = vadd.xlane.f32.xlu0 %v1335
    %v1337 = vpop.xlane.xlu0 %1336
    %v1338 = vsel %vm45, %v1334, 0.0
    %1339 = vadd.xlane.f32.xlu0 %v1338
    %v1340 = vpop.xlane.xlu0 %1339
    %v1341 = vmul.f32 %v1337, %v1095
    %v1342 = vmul.f32 %v1340, %v1095
    %v1343 = vadd.f32 %v1341, 1e-05
    %v1344 = vadd.f32 %v1342, 1e-05
    %v1345 = vrsqrt.pop %v1343
    %v1346 = vrsqrt.pop %v1344
    %v1347 = vmul.f32 %v1331, %v1345
    %v1348 = vmul.f32 %v1332, %v1346
    %v1349 = vlaneseq
    %v1350 = vshrl.u32 %v1349, 7
    %v1351 = vsub.s32 4, %v1350
    %v1352 = vrot.slane %v40, %v1351
    %v1353 = vmul.f32 %v1347, %v1352
    %v1354 = vmul.f32 %v1348, %v1352
    %v1355 = vlaneseq
    %v1356 = vshrl.u32 %v1355, 7
    %v1357 = vsub.s32 5, %v1356
    %v1358 = vrot.slane %v40, %v1357
    %v1359 = vadd.f32 %v1353, %v1358
    %v1360 = vadd.f32 %v1354, %v1358
    %1361 = vst.msk [vmem:[#allocation5] sm:$0xff] %vm45, %v1359
    %1362 = vst.msk [vmem:[#allocation5 + $0x8] sm:$0xff] %vm45, %v1360
    // Predicated region
    $region30: #{tpu_custom_call.1} parent=1 // pred_check
      _
    $region31: #{tpu_custom_call.1} parent=1 // pred_check_branch
      %1364 = sbr.rel (0) target = $region33
    $region32: #{tpu_custom_call.1} parent=1 // pred_region
      %s1366 = ssub.s32 256, 256
      %1367 = vsyncadd [#allocation4], %s1366
      %s1368 = sshll.u32 [#allocation5], 4
      %s1369 = int_to_ptr.vmem [resolvable:$true] %s1368
      %1374 = dma.vmem_to_hbm [thread:$0]  %s1369, 256, %s6, [#allocation4], 128, 128, 8
    $region33: #{tpu_custom_call.1} parent=1 // pred_fallthru
      _
    // Predicated region
    $region34: #{tpu_custom_call.1} parent=1 // pred_check
      _
    $region35: #{tpu_custom_call.1} parent=1 // pred_check_branch
      %1376 = sbr.rel (0) target = $region37
    $region36: #{tpu_custom_call.1} parent=1 // pred_region
      %1377 = dma.done [#allocation4], 256
    $region37: #{tpu_custom_call.1} parent=1 // pred_fallthru
      _
    %1378 = vsyncpa [#allocation3], 1
    %1379 = vsyncpa [#allocation4], 1

</llo_original>
